<compile_context>
chip_gen: v5e
topology: v5e:2x2
jax: 0.10.0
libtpu: 0.0.40
codegen_flags: <defaults>
</compile_context>

<pallas_src>
import functools

import jax
import jax.numpy as jnp
from jax.experimental import pallas as pl
from jax.experimental.pallas import tpu as pltpu

cond_shape = 10
flat_shape = [784]
intermediate_dim = 400
z_dim = 20

OUT_DIM = flat_shape[0] + cond_shape          # 794
OUT_PAD = ((OUT_DIM + 127) // 128) * 128      # 896  (lane-dense output stores)


def _round_up(x, m):
    return (x + m - 1) // m * m


def dense_decoder_kernel(z_ref, y_ref, w1z_ref, w1y_ref, b1_ref, w2_ref, b2_ref, o_ref):
    # z_ref : (TB, z_dim) bf16        y_ref : (TB, cond_shape) bf16
    # w1z   : (z_dim, 400) bf16       w1y   : (cond_shape, 400) bf16
    # b1    : (1, 400) f32            w2    : (400, OUT_PAD) bf16
    # b2    : (1, OUT_PAD) f32        o_ref : (TB, OUT_PAD) f32
    #
    # Fused cat([z, y]) @ W1: two MXU dots into one f32 accumulator.
    h = jnp.dot(z_ref[...], w1z_ref[...], preferred_element_type=jnp.float32)
    h = h + jnp.dot(y_ref[...], w1y_ref[...], preferred_element_type=jnp.float32)
    h = jnp.maximum(h + b1_ref[...], 0.0)                    # f32 bias + ReLU (VPU)
    # Second (dominant) matmul at native bf16 MXU rate, f32 accumulation.
    o = jnp.dot(h.astype(w2_ref.dtype), w2_ref[...], preferred_element_type=jnp.float32)
    o_ref[...] = jax.nn.sigmoid(o + b2_ref[...]).astype(o_ref.dtype)   # sigmoid (EUP)


def prepare_params(params):
    """f32 master params (w1, b1, w2, b2) in (in, out) layout -> kernel params.

    - split W1 rows into z / y halves so the kernel fuses the concat,
    - cast weights to bf16 (matmuls accumulate in f32), biases stay f32,
    - lane-pad the 794-wide output dim of w2/b2 to 896 with zeros.
    """
    w1, b1, w2, b2 = params
    w1z = w1[:z_dim].astype(jnp.bfloat16)
    w1y = w1[z_dim:].astype(jnp.bfloat16)
    pad = OUT_PAD - OUT_DIM
    w2p = jnp.pad(w2, ((0, 0), (0, pad))).astype(jnp.bfloat16)
    b2p = jnp.pad(b2, ((0, 0), (0, pad))).astype(jnp.float32)
    return w1z, w1y, b1.astype(jnp.float32), w2p, b2p


@functools.partial(jax.jit, static_argnames=("block_b",))
def dense_decoder(z, y, kernel_params, block_b=256):
    """z: (B, 20) f32, y: (B, 10) f32 -> (B, 794) f32."""
    w1z, w1y, b1, w2p, b2p = kernel_params
    B = z.shape[0]

    # Batch tile: >=256 fills the MXU M dim at large B; shrink for tiny B.
    tb = min(block_b, _round_up(B, 8))
    b_pad = _round_up(B, tb)
    if b_pad != B:
        z = jnp.pad(z, ((0, b_pad - B), (0, 0)))
        y = jnp.pad(y, ((0, b_pad - B), (0, 0)))
    zb = z.astype(jnp.bfloat16)
    yb = y.astype(jnp.bfloat16)

    out = pl.pallas_call(
        dense_decoder_kernel,
        out_shape=jax.ShapeDtypeStruct((b_pad, OUT_PAD), jnp.float32),
        grid=(b_pad // tb,),
        in_specs=[
            pl.BlockSpec((tb, z_dim), lambda i: (i, 0)),                       # z tile
            pl.BlockSpec((tb, cond_shape), lambda i: (i, 0)),                  # y tile
            pl.BlockSpec((z_dim, intermediate_dim), lambda i: (0, 0)),         # w1[:20]  (resident)
            pl.BlockSpec((cond_shape, intermediate_dim), lambda i: (0, 0)),    # w1[20:]  (resident)
            pl.BlockSpec((1, intermediate_dim), lambda i: (0, 0)),             # b1       (resident)
            pl.BlockSpec((intermediate_dim, OUT_PAD), lambda i: (0, 0)),       # w2       (resident)
            pl.BlockSpec((1, OUT_PAD), lambda i: (0, 0)),                      # b2       (resident)
        ],
        out_specs=pl.BlockSpec((tb, OUT_PAD), lambda i: (i, 0)),
        compiler_params=pltpu.CompilerParams(
            dimension_semantics=("parallel",),       # megacore-shard the batch grid
            vmem_limit_bytes=32 * 1024 * 1024,       # plenty of headroom on v5e/v6e/v7x
        ),
    )(zb, yb, w1z, w1y, b1, w2p, b2p)

    # Drop padded rows / padded lanes.
    return out[:B, :OUT_DIM]


def init_params(key):
    """Deterministic f32 master params matching PyTorch nn.Linear init.

    PyTorch stores weight as (out, in); here weights are kept transposed
    (in, out) so the kernel computes x @ W. Uniform(-1/sqrt(fan_in), ...).
    """
    k1, k2, k3, k4 = jax.random.split(key, 4)
    in1 = z_dim + cond_shape
    in2 = intermediate_dim
    bound1 = 1.0 / jnp.sqrt(in1)
    bound2 = 1.0 / jnp.sqrt(in2)
    w1 = jax.random.uniform(k1, (in1, intermediate_dim), jnp.float32, -bound1, bound1)
    b1 = jax.random.uniform(k2, (1, intermediate_dim), jnp.float32, -bound1, bound1)
    w2 = jax.random.uniform(k3, (in2, OUT_DIM), jnp.float32, -bound2, bound2)
    b2 = jax.random.uniform(k4, (1, OUT_DIM), jnp.float32, -bound2, bound2)
    return w1, b1, w2, b2


if __name__ == "__main__":
    key = jax.random.PRNGKey(0)
    kp, kz, ky = jax.random.split(key, 3)

    master = init_params(kp)
    kparams = prepare_params(master)      # bf16 / split / padded, done once

    def reference(z, y):
        t = jnp.concatenate([z, y], axis=1)
        h = jnp.maximum(t @ master[0] + master[1], 0.0)
        return jax.nn.sigmoid(h @ master[2] + master[3])

    # Small batch (single grid step).
    B = 8
    z = jax.random.normal(kz, (B, z_dim), jnp.float32)
    y = jax.random.normal(ky, (B, cond_shape), jnp.float32)
    out = jax.block_until_ready(dense_decoder(z, y, kparams))
    assert out.shape == (B, OUT_DIM)
    # bf16 weights -> relaxed tolerance vs the pure-f32 reference.
    assert jnp.allclose(out, reference(z, y), atol=1e-2, rtol=1e-2)

    # Un-aligned larger batch: exercises the gridded + padded-tail path.
    B2 = 300
    z2 = jax.random.normal(kz, (B2, z_dim), jnp.float32)
    y2 = jax.random.normal(ky, (B2, cond_shape), jnp.float32)
    out2 = jax.block_until_ready(dense_decoder(z2, y2, kparams))
    assert out2.shape == (B2, OUT_DIM)
    assert jnp.allclose(out2, reference(z2, y2), atol=1e-2, rtol=1e-2)

    print("KERNEL_OK")
</pallas_src>

<mosaic_0001>
module attributes {stable_mosaic.version = 11 : i64} {
  func.func @dense_decoder_kernel(%arg0: i32, %arg1: memref<8x20xbf16, #tpu.memory_space<vmem>>, %arg2: memref<8x10xbf16, #tpu.memory_space<vmem>>, %arg3: memref<20x400xbf16, #tpu.memory_space<vmem>>, %arg4: memref<10x400xbf16, #tpu.memory_space<vmem>>, %arg5: memref<1x400xf32, #tpu.memory_space<vmem>>, %arg6: memref<400x896xbf16, #tpu.memory_space<vmem>>, %arg7: memref<1x896xf32, #tpu.memory_space<vmem>>, %arg8: memref<8x896xf32, #tpu.memory_space<vmem>>) attributes {dimension_semantics = [#tpu.dimension_semantics<parallel>], iteration_bounds = array<i64: 1>, scalar_prefetch = 0 : i64, scratch_operands = 0 : i64, tpu.core_type = #tpu.core_type<tc>, window_params = [{transform_indices = @transform_0, window_bounds = array<i64: 8, 20>}, {transform_indices = @transform_1, window_bounds = array<i64: 8, 10>}, {pipeline_mode = #tpu.pipeline_mode<synchronous>, transform_indices = @transform_2, window_bounds = array<i64: 20, 400>}, {pipeline_mode = #tpu.pipeline_mode<synchronous>, transform_indices = @transform_3, window_bounds = array<i64: 10, 400>}, {pipeline_mode = #tpu.pipeline_mode<synchronous>, transform_indices = @transform_4, window_bounds = array<i64: 1, 400>}, {pipeline_mode = #tpu.pipeline_mode<synchronous>, transform_indices = @transform_5, window_bounds = array<i64: 400, 896>}, {pipeline_mode = #tpu.pipeline_mode<synchronous>, transform_indices = @transform_6, window_bounds = array<i64: 1, 896>}, {transform_indices = @transform_7, window_bounds = array<i64: 8, 896>}]} {
    %c0 = arith.constant 0 : index
    %c0_0 = arith.constant 0 : index
    %0 = vector.load %arg1[%c0, %c0_0] : memref<8x20xbf16, #tpu.memory_space<vmem>>, vector<8x20xbf16>
    %c0_1 = arith.constant 0 : index
    %c0_2 = arith.constant 0 : index
    %1 = vector.load %arg3[%c0_1, %c0_2] : memref<20x400xbf16, #tpu.memory_space<vmem>>, vector<20x400xbf16>
    %cst = arith.constant dense<0.000000e+00> : vector<8x400xf32>
    %2 = tpu.matmul %0, %1, %cst {dimension_numbers = #tpu.dot_dimension_numbers<[1], [0], [0], [1], [0, 0, 1, 1], [], []>} : vector<8x20xbf16>, vector<20x400xbf16>, vector<8x400xf32> -> vector<8x400xf32>
    %c0_3 = arith.constant 0 : index
    %c0_4 = arith.constant 0 : index
    %3 = vector.load %arg2[%c0_3, %c0_4] : memref<8x10xbf16, #tpu.memory_space<vmem>>, vector<8x10xbf16>
    %c0_5 = arith.constant 0 : index
    %c0_6 = arith.constant 0 : index
    %4 = vector.load %arg4[%c0_5, %c0_6] : memref<10x400xbf16, #tpu.memory_space<vmem>>, vector<10x400xbf16>
    %cst_7 = arith.constant dense<0.000000e+00> : vector<8x400xf32>
    %5 = tpu.matmul %3, %4, %cst_7 {dimension_numbers = #tpu.dot_dimension_numbers<[1], [0], [0], [1], [0, 0, 1, 1], [], []>} : vector<8x10xbf16>, vector<10x400xbf16>, vector<8x400xf32> -> vector<8x400xf32>
    %6 = arith.addf %2, %5 : vector<8x400xf32>
    %c0_8 = arith.constant 0 : index
    %c0_9 = arith.constant 0 : index
    %7 = vector.load %arg5[%c0_8, %c0_9] : memref<1x400xf32, #tpu.memory_space<vmem>>, vector<1x400xf32>
    %8 = vector.broadcast %7 : vector<1x400xf32> to vector<8x400xf32>
    %9 = arith.addf %6, %8 : vector<8x400xf32>
    %cst_10 = arith.constant 0.000000e+00 : f32
    %10 = vector.broadcast %cst_10 : f32 to vector<8x400xf32>
    %11 = arith.maximumf %9, %10 : vector<8x400xf32>
    %12 = arith.truncf %11 : vector<8x400xf32> to vector<8x400xbf16>
    %c0_11 = arith.constant 0 : index
    %c0_12 = arith.constant 0 : index
    %13 = vector.load %arg6[%c0_11, %c0_12] : memref<400x896xbf16, #tpu.memory_space<vmem>>, vector<400x896xbf16>
    %cst_13 = arith.constant dense<0.000000e+00> : vector<8x896xf32>
    %14 = tpu.matmul %12, %13, %cst_13 {dimension_numbers = #tpu.dot_dimension_numbers<[1], [0], [0], [1], [0, 0, 1, 1], [], []>} : vector<8x400xbf16>, vector<400x896xbf16>, vector<8x896xf32> -> vector<8x896xf32>
    %c0_14 = arith.constant 0 : index
    %c0_15 = arith.constant 0 : index
    %15 = vector.load %arg7[%c0_14, %c0_15] : memref<1x896xf32, #tpu.memory_space<vmem>>, vector<1x896xf32>
    %16 = vector.broadcast %15 : vector<1x896xf32> to vector<8x896xf32>
    %17 = arith.addf %14, %16 : vector<8x896xf32>
    %18 = arith.negf %17 : vector<8x896xf32>
    %19 = math.exp %18 : vector<8x896xf32>
    %cst_16 = arith.constant 1.000000e+00 : f32
    %20 = vector.broadcast %cst_16 : f32 to vector<8x896xf32>
    %21 = arith.addf %20, %19 : vector<8x896xf32>
    %22 = arith.divf %20, %21 : vector<8x896xf32>
    %c0_17 = arith.constant 0 : index
    %c0_18 = arith.constant 0 : index
    %23 = vector.load %arg8[%c0_17, %c0_18] : memref<8x896xf32, #tpu.memory_space<vmem>>, vector<8x896xf32>
    tpu.vector_store %arg8[%c0_17, %c0_18], %22 {strides = array<i32>} : memref<8x896xf32, #tpu.memory_space<vmem>>, vector<8x896xf32>,
    return
  }
  func.func @transform_0(%arg0: i32) -> (i32, i32) {
    %c0_i32 = arith.constant 0 : i32
    %c0_i32_0 = arith.constant 0 : i32
    return %arg0, %c0_i32 : i32, i32
  }
  func.func @transform_1(%arg0: i32) -> (i32, i32) {
    %c0_i32 = arith.constant 0 : i32
    %c0_i32_0 = arith.constant 0 : i32
    return %arg0, %c0_i32 : i32, i32
  }
  func.func @transform_2(%arg0: i32) -> (i32, i32) {
    %c0_i32 = arith.constant 0 : i32
    %c0_i32_0 = arith.constant 0 : i32
    %c0_i32_1 = arith.constant 0 : i32
    return %c0_i32, %c0_i32_0 : i32, i32
  }
  func.func @transform_3(%arg0: i32) -> (i32, i32) {
    %c0_i32 = arith.constant 0 : i32
    %c0_i32_0 = arith.constant 0 : i32
    %c0_i32_1 = arith.constant 0 : i32
    return %c0_i32, %c0_i32_0 : i32, i32
  }
  func.func @transform_4(%arg0: i32) -> (i32, i32) {
    %c0_i32 = arith.constant 0 : i32
    %c0_i32_0 = arith.constant 0 : i32
    %c0_i32_1 = arith.constant 0 : i32
    return %c0_i32, %c0_i32_0 : i32, i32
  }
  func.func @transform_5(%arg0: i32) -> (i32, i32) {
    %c0_i32 = arith.constant 0 : i32
    %c0_i32_0 = arith.constant 0 : i32
    %c0_i32_1 = arith.constant 0 : i32
    return %c0_i32, %c0_i32_0 : i32, i32
  }
  func.func @transform_6(%arg0: i32) -> (i32, i32) {
    %c0_i32 = arith.constant 0 : i32
    %c0_i32_0 = arith.constant 0 : i32
    %c0_i32_1 = arith.constant 0 : i32
    return %c0_i32, %c0_i32_0 : i32, i32
  }
  func.func @transform_7(%arg0: i32) -> (i32, i32) {
    %c0_i32 = arith.constant 0 : i32
    %c0_i32_0 = arith.constant 0 : i32
    return %arg0, %c0_i32 : i32, i32
  }
}

</mosaic_0001>

<llo_original>
// kernel: dense_decoder.1
$region0: #{dense_decoder.1}
  #allocation0 [shape = 'u32[]', space=smem, size = 0x4, offset = 0x4, fixed_abs, tag = 'smem constant byte address 0x4 - core index']
  #allocation1 [shape = 'u32[72,128]{1,0:T(1,128)}', space=vmem, size = 0x9000, scoped, tag = 'internal scratch']
  %s0 = inlined_call_operand.vmem [shape: bf16[8,20], index: 0, kind: input, shape index: {}]
  %s1 = inlined_call_operand.vmem [shape: bf16[8,10], index: 1, kind: input, shape index: {}]
  %s2 = inlined_call_operand.hbm [shape: bf16[20,400], index: 2, kind: input, shape index: {}]
  %s3 = inlined_call_operand.hbm [shape: bf16[10,400], index: 3, kind: input, shape index: {}]
  %s4 = inlined_call_operand.vmem [shape: f32[1,400], index: 4, kind: input, shape index: {}]
  %s5 = inlined_call_operand.hbm [shape: bf16[400,896], index: 5, kind: input, shape index: {}]
  %s6 = inlined_call_operand.vmem [shape: f32[1,896], index: 6, kind: input, shape index: {}]
  %s7 = inlined_call_operand.hbm [shape: f32[8,896], index: 7, kind: output, shape index: {}]
  %s8 = sld [smem:[#allocation0]]
  $region50: #{dense_decoder.1} parent=0
    _
  %s10 = ssub.s32 1, %s8
  %s11 = scalar_select 0, %s10, %s8
  $region1: #{dense_decoder.1} parent=0
    #allocation2 [shape = 'u8[24576]{0}', space=vmem, size = 0x6000, scoped, tag = 'input window, operand 2, single buffered']
    #allocation3 [shape = 's32[1]{0}', space=sflag, size = 0x4, scoped, tag = 'scoped memory for dense_decoder.1']
    #allocation4 [shape = 's32[1]{0}', space=sflag, size = 0x4, scoped, tag = 'scoped memory for dense_decoder.1']
    #allocation5 [shape = 'u8[16384]{0}', space=vmem, size = 0x4000, scoped, tag = 'input window, operand 3, single buffered']
    #allocation6 [shape = 's32[1]{0}', space=sflag, size = 0x4, scoped, tag = 'scoped memory for dense_decoder.1']
    #allocation7 [shape = 'u8[716800]{0}', space=vmem, size = 0xaf000, scoped, tag = 'input window, operand 5, single buffered']
    #allocation8 [shape = 'u8[28672]{0}', space=vmem, size = 0x7000, scoped, tag = 'output window, operand 0, single buffered']
    %12 = vsyncpa [#allocation3], 0
    %13 = vsyncpa [#allocation6], 0
    %14 = vsyncpa [#allocation4], 0
    // Predicated region
    $region2: #{dense_decoder.1} parent=1 // pred_check
      _
    $region3: #{dense_decoder.1} parent=1 // pred_check_branch
      %16 = sbr.rel (0) target = $region5
    $region4: #{dense_decoder.1} parent=1 // pred_region
      _
    $region5: #{dense_decoder.1} parent=1 // pred_fallthru
      _
    // Predicated region
    $region6: #{dense_decoder.1} parent=1 // pred_check
      _
    $region7: #{dense_decoder.1} parent=1 // pred_check_branch
      %18 = sbr.rel (0) target = $region9
    $region8: #{dense_decoder.1} parent=1 // pred_region
      _
    $region9: #{dense_decoder.1} parent=1 // pred_fallthru
      _
    // Predicated region
    $region10: #{dense_decoder.1} parent=1 // pred_check
      _
    $region11: #{dense_decoder.1} parent=1 // pred_check_branch
      %20 = sbr.rel (0) target = $region13
    $region12: #{dense_decoder.1} parent=1 // pred_region
      %22 = vsyncadd [#allocation3], 0
      %s23 = sshll.u32 %s2, 4
      %s24 = int_to_ptr.hbm [resolvable:$true] %s23
      %s25 = sshll.u32 [#allocation2], 4
      %s26 = int_to_ptr.vmem [resolvable:$true] %s25
      %31 = dma.hbm_to_vmem [thread:$0]  %s24, 768, %s26, [#allocation3], 256, 256, 16
    $region13: #{dense_decoder.1} parent=1 // pred_fallthru
      _
    // Predicated region
    $region14: #{dense_decoder.1} parent=1 // pred_check
      _
    $region15: #{dense_decoder.1} parent=1 // pred_check_branch
      %33 = sbr.rel (0) target = $region17
    $region16: #{dense_decoder.1} parent=1 // pred_region
      %35 = vsyncadd [#allocation6], 0
      %s36 = sshll.u32 %s3, 4
      %s37 = int_to_ptr.hbm [resolvable:$true] %s36
      %s38 = sshll.u32 [#allocation5], 4
      %s39 = int_to_ptr.vmem [resolvable:$true] %s38
      %44 = dma.hbm_to_vmem [thread:$0]  %s37, 512, %s39, [#allocation6], 256, 256, 16
    $region17: #{dense_decoder.1} parent=1 // pred_fallthru
      _
    // Predicated region
    $region18: #{dense_decoder.1} parent=1 // pred_check
      _
    $region19: #{dense_decoder.1} parent=1 // pred_check_branch
      %46 = sbr.rel (0) target = $region21
    $region20: #{dense_decoder.1} parent=1 // pred_region
      _
    $region21: #{dense_decoder.1} parent=1 // pred_fallthru
      _
    // Predicated region
    $region22: #{dense_decoder.1} parent=1 // pred_check
      _
    $region23: #{dense_decoder.1} parent=1 // pred_check_branch
      %48 = sbr.rel (0) target = $region25
    $region24: #{dense_decoder.1} parent=1 // pred_region
      %50 = vsyncadd [#allocation6], 0
      %s51 = sshll.u32 %s5, 4
      %s52 = int_to_ptr.hbm [resolvable:$true] %s51
      %s53 = sshll.u32 [#allocation7], 4
      %s54 = int_to_ptr.vmem [resolvable:$true] %s53
      %59 = dma.hbm_to_vmem [thread:$0]  %s52, 22400, %s54, [#allocation6], 448, 448, 28
    $region25: #{dense_decoder.1} parent=1 // pred_fallthru
      _
    // Predicated region
    $region26: #{dense_decoder.1} parent=1 // pred_check
      _
    $region27: #{dense_decoder.1} parent=1 // pred_check_branch
      %61 = sbr.rel (0) target = $region29
    $region28: #{dense_decoder.1} parent=1 // pred_region
      _
    $region29: #{dense_decoder.1} parent=1 // pred_fallthru
      _
    // Predicated region
    $region30: #{dense_decoder.1} parent=1 // pred_check
      _
    $region31: #{dense_decoder.1} parent=1 // pred_check_branch
      %63 = sbr.rel (0) target = $region33
    $region32: #{dense_decoder.1} parent=1 // pred_region
      %65 = dma.done [#allocation3], 768
    $region33: #{dense_decoder.1} parent=1 // pred_fallthru
      _
    // Predicated region
    $region34: #{dense_decoder.1} parent=1 // pred_check
      _
    $region35: #{dense_decoder.1} parent=1 // pred_check_branch
      %67 = sbr.rel (0) target = $region37
    $region36: #{dense_decoder.1} parent=1 // pred_region
      %69 = dma.done [#allocation6], 512
    $region37: #{dense_decoder.1} parent=1 // pred_fallthru
      _
    // Predicated region
    $region38: #{dense_decoder.1} parent=1 // pred_check
      _
    $region39: #{dense_decoder.1} parent=1 // pred_check_branch
      %71 = sbr.rel (0) target = $region41
    $region40: #{dense_decoder.1} parent=1 // pred_region
      %73 = dma.done [#allocation6], 22400
    $region41: #{dense_decoder.1} parent=1 // pred_fallthru
      _
    %v75 = vld [vmem:[%s0] sm:$0xf]
    %v76 = vld [vmem:[#allocation2] sm:$0xff]
    %v77 = vld [vmem:[#allocation2 + $0x8] sm:$0xff]
    %v78 = vld [vmem:[#allocation2 + $0x10] sm:$0xff]
    %v79 = vld [vmem:[#allocation2 + $0x18] sm:$0xff]
    %v80 = vld [vmem:[#allocation2 + $0x20] sm:$0x33]
    %v81 = vld [vmem:[#allocation2 + $0x28] sm:$0x33]
    %v82 = vld [vmem:[%s1] sm:$0xf]
    %v83 = vld [vmem:[#allocation5] sm:$0xff]
    %v84 = vld [vmem:[#allocation5 + $0x8] sm:$0xff]
    %v85 = vld [vmem:[#allocation5 + $0x10] sm:$0x11]
    %v86 = vld [vmem:[#allocation5 + $0x18] sm:$0x11]
    %v91 = vunpack.c.l.b16 %v83
    %v92 = vunpack.c.h.b16 %v83
    %v93 = vunpack.c.l.b16 %v84
    %v94 = vunpack.c.h.b16 %v84
    %v95 = vunpack.c.l.b16 %v85
    %v96 = vunpack.c.h.b16 %v85
    %v97 = vunpack.c.l.b16 %v86
    %v98 = vunpack.c.h.b16 %v86
    %v99 = vpack.c.b16 %v95, %v91
    %v100 = vpack.c.b16 %v96, %v92
    %v101 = vpack.c.b16 %v97, %v93
    %v102 = vpack.c.b16 %v98, %v94
    %vm103 = vcmask 80896
    %v105 = vsel %vm103, %v82, 0
    %vm107 = vcmask 1044480
    %v109 = vsel %vm107, %v99, 0
    %v112 = vsel %vm107, %v100, 0
    %v115 = vsel %vm107, %v101, 0
    %v118 = vsel %vm107, %v102, 0
    %120 = vmatpush.bf16.msra.mxu0 0
    %121 = vmatpush.bf16.msra.mxu0 0
    %122 = vmatpush.bf16.msra.mxu0 0
    %123 = vmatpush.bf16.msra.mxu0 0
    %124 = vmatpush.bf16.msra.mxu0 0
    %125 = vmatpush.bf16.msra.mxu0 0
    %126 = vmatpush.bf16.msra.mxu0 0
    %127 = vmatpush.bf16.msra.mxu0 %v109
    %128 = vmatmul.bf16.gmra.mxu0 %v105
    %v129 = vpop.f32.mrf.mxu0
    %v130 = vadd.f32 0.0, %v129
    %v131 = vpop.f32.mrf.mxu0
    %132 = vdwg.mxu0
    %133 = vmatpush.bf16.msra.mxu0 0
    %134 = vmatpush.bf16.msra.mxu0 0
    %135 = vmatpush.bf16.msra.mxu0 0
    %136 = vmatpush.bf16.msra.mxu0 0
    %137 = vmatpush.bf16.msra.mxu0 0
    %138 = vmatpush.bf16.msra.mxu0 0
    %139 = vmatpush.bf16.msra.mxu0 0
    %140 = vmatpush.bf16.msra.mxu0 %v112
    %141 = vmatmul.bf16.gmra.mxu0 %v105
    %v142 = vpop.f32.mrf.mxu0
    %v143 = vadd.f32 0.0, %v142
    %v144 = vpop.f32.mrf.mxu0
    %145 = vdwg.mxu0
    %146 = vmatpush.bf16.msra.mxu0 0
    %147 = vmatpush.bf16.msra.mxu0 0
    %148 = vmatpush.bf16.msra.mxu0 0
    %149 = vmatpush.bf16.msra.mxu0 0
    %150 = vmatpush.bf16.msra.mxu0 0
    %151 = vmatpush.bf16.msra.mxu0 0
    %152 = vmatpush.bf16.msra.mxu0 0
    %153 = vmatpush.bf16.msra.mxu0 %v115
    %154 = vmatmul.bf16.gmra.mxu0 %v105
    %v155 = vpop.f32.mrf.mxu0
    %v156 = vadd.f32 0.0, %v155
    %v157 = vpop.f32.mrf.mxu0
    %158 = vdwg.mxu0
    %159 = vmatpush.bf16.msra.mxu0 0
    %160 = vmatpush.bf16.msra.mxu0 0
    %161 = vmatpush.bf16.msra.mxu0 0
    %162 = vmatpush.bf16.msra.mxu0 0
    %163 = vmatpush.bf16.msra.mxu0 0
    %164 = vmatpush.bf16.msra.mxu0 0
    %165 = vmatpush.bf16.msra.mxu0 0
    %166 = vmatpush.bf16.msra.mxu0 %v118
    %167 = vmatmul.bf16.gmra.mxu0 %v105
    %v168 = vpop.f32.mrf.mxu0
    %v169 = vadd.f32 0.0, %v168
    %v170 = vpop.f32.mrf.mxu0
    %171 = vdwg.mxu0
    %v178 = vunpack.c.l.b16 %v76
    %v179 = vunpack.c.h.b16 %v76
    %v180 = vunpack.c.l.b16 %v77
    %v181 = vunpack.c.h.b16 %v77
    %v182 = vunpack.c.l.b16 %v78
    %v183 = vunpack.c.h.b16 %v78
    %v184 = vunpack.c.l.b16 %v79
    %v185 = vunpack.c.h.b16 %v79
    %v186 = vunpack.c.l.b16 %v80
    %v187 = vunpack.c.h.b16 %v80
    %v188 = vunpack.c.l.b16 %v81
    %v189 = vunpack.c.h.b16 %v81
    %v190 = vpack.c.b16 %v182, %v178
    %v191 = vpack.c.b16 %v183, %v179
    %v192 = vpack.c.b16 %v184, %v180
    %v193 = vpack.c.b16 %v185, %v181
    %v194 = vpack.c.b16 %v186, %v186
    %v195 = vpack.c.b16 %v187, %v187
    %v196 = vpack.c.b16 %v188, %v188
    %v197 = vpack.c.b16 %v189, %v189
    %vm202 = vcmask 162816
    %v204 = vsel %vm202, %v75, 0
    %vm206 = vcmask 1041408
    %v208 = vsel %vm206, %v194, 0
    %v211 = vsel %vm206, %v195, 0
    %v214 = vsel %vm206, %v196, 0
    %v217 = vsel %vm206, %v197, 0
    %219 = vmatpush.bf16.msra.mxu0 0
    %220 = vmatpush.bf16.msra.mxu0 0
    %221 = vmatpush.bf16.msra.mxu0 0
    %222 = vmatpush.bf16.msra.mxu0 0
    %223 = vmatpush.bf16.msra.mxu0 0
    %224 = vmatpush.bf16.msra.mxu0 0
    %225 = vmatpush.bf16.msra.mxu0 %v208
    %226 = vmatpush.bf16.msra.mxu0 %v190
    %227 = vmatmul.bf16.gmra.mxu0 %v204
    %v228 = vpop.f32.mrf.mxu0
    %v229 = vadd.f32 %v130, %v228
    %v230 = vpop.f32.mrf.mxu0
    %231 = vdwg.mxu0
    %232 = vmatpush.bf16.msra.mxu0 0
    %233 = vmatpush.bf16.msra.mxu0 0
    %234 = vmatpush.bf16.msra.mxu0 0
    %235 = vmatpush.bf16.msra.mxu0 0
    %236 = vmatpush.bf16.msra.mxu0 0
    %237 = vmatpush.bf16.msra.mxu0 0
    %238 = vmatpush.bf16.msra.mxu0 %v211
    %239 = vmatpush.bf16.msra.mxu0 %v191
    %240 = vmatmul.bf16.gmra.mxu0 %v204
    %v241 = vpop.f32.mrf.mxu0
    %v242 = vadd.f32 %v143, %v241
    %v243 = vpop.f32.mrf.mxu0
    %244 = vdwg.mxu0
    %245 = vmatpush.bf16.msra.mxu0 0
    %246 = vmatpush.bf16.msra.mxu0 0
    %247 = vmatpush.bf16.msra.mxu0 0
    %248 = vmatpush.bf16.msra.mxu0 0
    %249 = vmatpush.bf16.msra.mxu0 0
    %250 = vmatpush.bf16.msra.mxu0 0
    %251 = vmatpush.bf16.msra.mxu0 %v214
    %252 = vmatpush.bf16.msra.mxu0 %v192
    %253 = vmatmul.bf16.gmra.mxu0 %v204
    %v254 = vpop.f32.mrf.mxu0
    %v255 = vadd.f32 %v156, %v254
    %v256 = vpop.f32.mrf.mxu0
    %257 = vdwg.mxu0
    %258 = vmatpush.bf16.msra.mxu0 0
    %259 = vmatpush.bf16.msra.mxu0 0
    %260 = vmatpush.bf16.msra.mxu0 0
    %261 = vmatpush.bf16.msra.mxu0 0
    %262 = vmatpush.bf16.msra.mxu0 0
    %263 = vmatpush.bf16.msra.mxu0 0
    %264 = vmatpush.bf16.msra.mxu0 %v217
    %265 = vmatpush.bf16.msra.mxu0 %v193
    %266 = vmatmul.bf16.gmra.mxu0 %v204
    %v267 = vpop.f32.mrf.mxu0
    %v268 = vadd.f32 %v169, %v267
    %v269 = vpop.f32.mrf.mxu0
    %270 = vdwg.mxu0
    %v271 = vld [vmem:[%s4] sm:$0xf]
    %v273 = vperm.slane %v271, 0
    %v274 = vperm.slane %v271, 1
    %v275 = vperm.slane %v271, 2
    %v276 = vperm.slane %v271, 3
    %v281 = vadd.f32 %v229, %v273
    %v282 = vadd.f32 %v242, %v274
    %v283 = vadd.f32 %v255, %v275
    %v284 = vadd.f32 %v268, %v276
    %v285 = vmax.f32 %v281, 0.0
    %v286 = vmax.f32 %v282, 0.0
    %v287 = vmax.f32 %v283, 0.0
    %v288 = vmax.f32 %v284, 0.0
    %v289 = vpack.c.bf16 %v285, %v285
    %v290 = vpack.c.bf16 %v286, %v286
    %v291 = vpack.c.bf16 %v287, %v287
    %v292 = vpack.c.bf16 %v288, %v288
    %v293 = vld [vmem:[#allocation7] sm:$0xff]
    %v294 = vld [vmem:[#allocation7 + $0x8] sm:$0xff]
    %v295 = vld [vmem:[#allocation7 + $0x10] sm:$0xff]
    %v296 = vld [vmem:[#allocation7 + $0x18] sm:$0xf]
    %v297 = vld [vmem:[#allocation7 + $0x1c] sm:$0xff]
    %v298 = vld [vmem:[#allocation7 + $0x24] sm:$0xff]
    %v299 = vld [vmem:[#allocation7 + $0x2c] sm:$0xff]
    %v300 = vld [vmem:[#allocation7 + $0x34] sm:$0xf]
    %v301 = vld [vmem:[#allocation7 + $0x38] sm:$0xff]
    %v302 = vld [vmem:[#allocation7 + $0x40] sm:$0xff]
    %v303 = vld [vmem:[#allocation7 + $0x48] sm:$0xff]
    %v304 = vld [vmem:[#allocation7 + $0x50] sm:$0xf]
    %v305 = vld [vmem:[#allocation7 + $0x54] sm:$0xff]
    %v306 = vld [vmem:[#allocation7 + $0x5c] sm:$0xff]
    %v307 = vld [vmem:[#allocation7 + $0x64] sm:$0xff]
    %v308 = vld [vmem:[#allocation7 + $0x6c] sm:$0xf]
    %v309 = vld [vmem:[#allocation7 + $0x70] sm:$0xff]
    %v310 = vld [vmem:[#allocation7 + $0x78] sm:$0xff]
    %v311 = vld [vmem:[#allocation7 + $0x80] sm:$0xff]
    %v312 = vld [vmem:[#allocation7 + $0x88] sm:$0xf]
    %v313 = vld [vmem:[#allocation7 + $0x8c] sm:$0xff]
    %v314 = vld [vmem:[#allocation7 + $0x94] sm:$0xff]
    %v315 = vld [vmem:[#allocation7 + $0x9c] sm:$0xff]
    %v316 = vld [vmem:[#allocation7 + $0xa4] sm:$0xf]
    %v317 = vld [vmem:[#allocation7 + $0xa8] sm:$0xff]
    %v318 = vld [vmem:[#allocation7 + $0xb0] sm:$0xff]
    %v319 = vld [vmem:[#allocation7 + $0xb8] sm:$0xff]
    %v320 = vld [vmem:[#allocation7 + $0xc0] sm:$0xf]
    %v321 = vld [vmem:[#allocation7 + $0xc4] sm:$0xff]
    %v322 = vld [vmem:[#allocation7 + $0xcc] sm:$0xff]
    %v323 = vld [vmem:[#allocation7 + $0xd4] sm:$0xff]
    %v324 = vld [vmem:[#allocation7 + $0xdc] sm:$0xf]
    %v325 = vld [vmem:[#allocation7 + $0xe0] sm:$0xff]
    %v326 = vld [vmem:[#allocation7 + $0xe8] sm:$0xff]
    %v327 = vld [vmem:[#allocation7 + $0xf0] sm:$0xff]
    %v328 = vld [vmem:[#allocation7 + $0xf8] sm:$0xf]
    %v329 = vld [vmem:[#allocation7 + $0xfc] sm:$0xff]
    %v330 = vld [vmem:[#allocation7 + $0x104] sm:$0xff]
    %v331 = vld [vmem:[#allocation7 + $0x10c] sm:$0xff]
    %v332 = vld [vmem:[#allocation7 + $0x114] sm:$0xf]
    %v333 = vld [vmem:[#allocation7 + $0x118] sm:$0xff]
    %v334 = vld [vmem:[#allocation7 + $0x120] sm:$0xff]
    %v335 = vld [vmem:[#allocation7 + $0x128] sm:$0xff]
    %v336 = vld [vmem:[#allocation7 + $0x130] sm:$0xf]
    %v337 = vld [vmem:[#allocation7 + $0x134] sm:$0xff]
    %v338 = vld [vmem:[#allocation7 + $0x13c] sm:$0xff]
    %v339 = vld [vmem:[#allocation7 + $0x144] sm:$0xff]
    %v340 = vld [vmem:[#allocation7 + $0x14c] sm:$0xf]
    %v341 = vld [vmem:[#allocation7 + $0x150] sm:$0xff]
    %v342 = vld [vmem:[#allocation7 + $0x158] sm:$0xff]
    %v343 = vld [vmem:[#allocation7 + $0x160] sm:$0xff]
    %v344 = vld [vmem:[#allocation7 + $0x168] sm:$0xf]
    %v345 = vld [vmem:[#allocation7 + $0x16c] sm:$0xff]
    %v346 = vld [vmem:[#allocation7 + $0x174] sm:$0xff]
    %v347 = vld [vmem:[#allocation7 + $0x17c] sm:$0xff]
    %v348 = vld [vmem:[#allocation7 + $0x184] sm:$0xf]
    %v349 = vld [vmem:[#allocation7 + $0x188] sm:$0xff]
    %v350 = vld [vmem:[#allocation7 + $0x190] sm:$0xff]
    %v351 = vld [vmem:[#allocation7 + $0x198] sm:$0xff]
    %v352 = vld [vmem:[#allocation7 + $0x1a0] sm:$0xf]
    %v353 = vld [vmem:[#allocation7 + $0x1a4] sm:$0xff]
    %v354 = vld [vmem:[#allocation7 + $0x1ac] sm:$0xff]
    %v355 = vld [vmem:[#allocation7 + $0x1b4] sm:$0xff]
    %v356 = vld [vmem:[#allocation7 + $0x1bc] sm:$0xf]
    %v357 = vld [vmem:[#allocation7 + $0x1c0] sm:$0xff]
    %v358 = vld [vmem:[#allocation7 + $0x1c8] sm:$0xff]
    %v359 = vld [vmem:[#allocation7 + $0x1d0] sm:$0xff]
    %v360 = vld [vmem:[#allocation7 + $0x1d8] sm:$0xf]
    %v361 = vld [vmem:[#allocation7 + $0x1dc] sm:$0xff]
    %v362 = vld [vmem:[#allocation7 + $0x1e4] sm:$0xff]
    %v363 = vld [vmem:[#allocation7 + $0x1ec] sm:$0xff]
    %v364 = vld [vmem:[#allocation7 + $0x1f4] sm:$0xf]
    %v365 = vld [vmem:[#allocation7 + $0x1f8] sm:$0xff]
    %v366 = vld [vmem:[#allocation7 + $0x200] sm:$0xff]
    %v367 = vld [vmem:[#allocation7 + $0x208] sm:$0xff]
    %v368 = vld [vmem:[#allocation7 + $0x210] sm:$0xf]
    %v369 = vld [vmem:[#allocation7 + $0x214] sm:$0xff]
    %v370 = vld [vmem:[#allocation7 + $0x21c] sm:$0xff]
    %v371 = vld [vmem:[#allocation7 + $0x224] sm:$0xff]
    %v372 = vld [vmem:[#allocation7 + $0x22c] sm:$0xf]
    %v373 = vld [vmem:[#allocation7 + $0x230] sm:$0xff]
    %v374 = vld [vmem:[#allocation7 + $0x238] sm:$0xff]
    %v375 = vld [vmem:[#allocation7 + $0x240] sm:$0xff]
    %v376 = vld [vmem:[#allocation7 + $0x248] sm:$0xf]
    %v377 = vld [vmem:[#allocation7 + $0x24c] sm:$0xff]
    %v378 = vld [vmem:[#allocation7 + $0x254] sm:$0xff]
    %v379 = vld [vmem:[#allocation7 + $0x25c] sm:$0xff]
    %v380 = vld [vmem:[#allocation7 + $0x264] sm:$0xf]
    %v381 = vld [vmem:[#allocation7 + $0x268] sm:$0xff]
    %v382 = vld [vmem:[#allocation7 + $0x270] sm:$0xff]
    %v383 = vld [vmem:[#allocation7 + $0x278] sm:$0xff]
    %v384 = vld [vmem:[#allocation7 + $0x280] sm:$0xf]
    %v385 = vld [vmem:[#allocation7 + $0x284] sm:$0xff]
    %v386 = vld [vmem:[#allocation7 + $0x28c] sm:$0xff]
    %v387 = vld [vmem:[#allocation7 + $0x294] sm:$0xff]
    %v388 = vld [vmem:[#allocation7 + $0x29c] sm:$0xf]
    %v389 = vld [vmem:[#allocation7 + $0x2a0] sm:$0xff]
    %v390 = vld [vmem:[#allocation7 + $0x2a8] sm:$0xff]
    %v391 = vld [vmem:[#allocation7 + $0x2b0] sm:$0xff]
    %v392 = vld [vmem:[#allocation7 + $0x2b8] sm:$0xf]
    %v393 = vld [vmem:[#allocation7 + $0x2bc] sm:$0xff]
    %v394 = vld [vmem:[#allocation7 + $0x2c4] sm:$0xff]
    %v395 = vld [vmem:[#allocation7 + $0x2cc] sm:$0xff]
    %v396 = vld [vmem:[#allocation7 + $0x2d4] sm:$0xf]
    %v397 = vld [vmem:[#allocation7 + $0x2d8] sm:$0xff]
    %v398 = vld [vmem:[#allocation7 + $0x2e0] sm:$0xff]
    %v399 = vld [vmem:[#allocation7 + $0x2e8] sm:$0xff]
    %v400 = vld [vmem:[#allocation7 + $0x2f0] sm:$0xf]
    %v401 = vld [vmem:[#allocation7 + $0x2f4] sm:$0xff]
    %v402 = vld [vmem:[#allocation7 + $0x2fc] sm:$0xff]
    %v403 = vld [vmem:[#allocation7 + $0x304] sm:$0xff]
    %v404 = vld [vmem:[#allocation7 + $0x30c] sm:$0xf]
    %v405 = vld [vmem:[#allocation7 + $0x310] sm:$0xff]
    %v406 = vld [vmem:[#allocation7 + $0x318] sm:$0xff]
    %v407 = vld [vmem:[#allocation7 + $0x320] sm:$0xff]
    %v408 = vld [vmem:[#allocation7 + $0x328] sm:$0xf]
    %v409 = vld [vmem:[#allocation7 + $0x32c] sm:$0xff]
    %v410 = vld [vmem:[#allocation7 + $0x334] sm:$0xff]
    %v411 = vld [vmem:[#allocation7 + $0x33c] sm:$0xff]
    %v412 = vld [vmem:[#allocation7 + $0x344] sm:$0xf]
    %v413 = vld [vmem:[#allocation7 + $0x348] sm:$0xff]
    %v414 = vld [vmem:[#allocation7 + $0x350] sm:$0xff]
    %v415 = vld [vmem:[#allocation7 + $0x358] sm:$0xff]
    %v416 = vld [vmem:[#allocation7 + $0x360] sm:$0xf]
    %v417 = vld [vmem:[#allocation7 + $0x364] sm:$0xff]
    %v418 = vld [vmem:[#allocation7 + $0x36c] sm:$0xff]
    %v419 = vld [vmem:[#allocation7 + $0x374] sm:$0xff]
    %v420 = vld [vmem:[#allocation7 + $0x37c] sm:$0xf]
    %v421 = vld [vmem:[#allocation7 + $0x380] sm:$0xff]
    %v422 = vld [vmem:[#allocation7 + $0x388] sm:$0xff]
    %v423 = vld [vmem:[#allocation7 + $0x390] sm:$0xff]
    %v424 = vld [vmem:[#allocation7 + $0x398] sm:$0xf]
    %v425 = vld [vmem:[#allocation7 + $0x39c] sm:$0xff]
    %v426 = vld [vmem:[#allocation7 + $0x3a4] sm:$0xff]
    %v427 = vld [vmem:[#allocation7 + $0x3ac] sm:$0xff]
    %v428 = vld [vmem:[#allocation7 + $0x3b4] sm:$0xf]
    %v429 = vld [vmem:[#allocation7 + $0x3b8] sm:$0xff]
    %v430 = vld [vmem:[#allocation7 + $0x3c0] sm:$0xff]
    %v431 = vld [vmem:[#allocation7 + $0x3c8] sm:$0xff]
    %v432 = vld [vmem:[#allocation7 + $0x3d0] sm:$0xf]
    %v433 = vld [vmem:[#allocation7 + $0x3d4] sm:$0xff]
    %v434 = vld [vmem:[#allocation7 + $0x3dc] sm:$0xff]
    %v435 = vld [vmem:[#allocation7 + $0x3e4] sm:$0xff]
    %v436 = vld [vmem:[#allocation7 + $0x3ec] sm:$0xf]
    %v437 = vld [vmem:[#allocation7 + $0x3f0] sm:$0xff]
    %v438 = vld [vmem:[#allocation7 + $0x3f8] sm:$0xff]
    %v439 = vld [vmem:[#allocation7 + $0x400] sm:$0xff]
    %v440 = vld [vmem:[#allocation7 + $0x408] sm:$0xf]
    %v441 = vld [vmem:[#allocation7 + $0x40c] sm:$0xff]
    %v442 = vld [vmem:[#allocation7 + $0x414] sm:$0xff]
    %v443 = vld [vmem:[#allocation7 + $0x41c] sm:$0xff]
    %v444 = vld [vmem:[#allocation7 + $0x424] sm:$0xf]
    %v445 = vld [vmem:[#allocation7 + $0x428] sm:$0xff]
    %v446 = vld [vmem:[#allocation7 + $0x430] sm:$0xff]
    %v447 = vld [vmem:[#allocation7 + $0x438] sm:$0xff]
    %v448 = vld [vmem:[#allocation7 + $0x440] sm:$0xf]
    %v449 = vld [vmem:[#allocation7 + $0x444] sm:$0xff]
    %v450 = vld [vmem:[#allocation7 + $0x44c] sm:$0xff]
    %v451 = vld [vmem:[#allocation7 + $0x454] sm:$0xff]
    %v452 = vld [vmem:[#allocation7 + $0x45c] sm:$0xf]
    %v453 = vld [vmem:[#allocation7 + $0x460] sm:$0xff]
    %v454 = vld [vmem:[#allocation7 + $0x468] sm:$0xff]
    %v455 = vld [vmem:[#allocation7 + $0x470] sm:$0xff]
    %v456 = vld [vmem:[#allocation7 + $0x478] sm:$0xf]
    %v457 = vld [vmem:[#allocation7 + $0x47c] sm:$0xff]
    %v458 = vld [vmem:[#allocation7 + $0x484] sm:$0xff]
    %v459 = vld [vmem:[#allocation7 + $0x48c] sm:$0xff]
    %v460 = vld [vmem:[#allocation7 + $0x494] sm:$0xf]
    %v461 = vld [vmem:[#allocation7 + $0x498] sm:$0xff]
    %v462 = vld [vmem:[#allocation7 + $0x4a0] sm:$0xff]
    %v463 = vld [vmem:[#allocation7 + $0x4a8] sm:$0xff]
    %v464 = vld [vmem:[#allocation7 + $0x4b0] sm:$0xf]
    %v465 = vld [vmem:[#allocation7 + $0x4b4] sm:$0xff]
    %v466 = vld [vmem:[#allocation7 + $0x4bc] sm:$0xff]
    %v467 = vld [vmem:[#allocation7 + $0x4c4] sm:$0xff]
    %v468 = vld [vmem:[#allocation7 + $0x4cc] sm:$0xf]
    %v469 = vld [vmem:[#allocation7 + $0x4d0] sm:$0xff]
    %v470 = vld [vmem:[#allocation7 + $0x4d8] sm:$0xff]
    %v471 = vld [vmem:[#allocation7 + $0x4e0] sm:$0xff]
    %v472 = vld [vmem:[#allocation7 + $0x4e8] sm:$0xf]
    %v473 = vld [vmem:[#allocation7 + $0x4ec] sm:$0xff]
    %v474 = vld [vmem:[#allocation7 + $0x4f4] sm:$0xff]
    %v475 = vld [vmem:[#allocation7 + $0x4fc] sm:$0xff]
    %v476 = vld [vmem:[#allocation7 + $0x504] sm:$0xf]
    %v477 = vld [vmem:[#allocation7 + $0x508] sm:$0xff]
    %v478 = vld [vmem:[#allocation7 + $0x510] sm:$0xff]
    %v479 = vld [vmem:[#allocation7 + $0x518] sm:$0xff]
    %v480 = vld [vmem:[#allocation7 + $0x520] sm:$0xf]
    %v481 = vld [vmem:[#allocation7 + $0x524] sm:$0xff]
    %v482 = vld [vmem:[#allocation7 + $0x52c] sm:$0xff]
    %v483 = vld [vmem:[#allocation7 + $0x534] sm:$0xff]
    %v484 = vld [vmem:[#allocation7 + $0x53c] sm:$0xf]
    %v485 = vld [vmem:[#allocation7 + $0x540] sm:$0xff]
    %v486 = vld [vmem:[#allocation7 + $0x548] sm:$0xff]
    %v487 = vld [vmem:[#allocation7 + $0x550] sm:$0xff]
    %v488 = vld [vmem:[#allocation7 + $0x558] sm:$0xf]
    %v489 = vld [vmem:[#allocation7 + $0x55c] sm:$0xff]
    %v490 = vld [vmem:[#allocation7 + $0x564] sm:$0xff]
    %v491 = vld [vmem:[#allocation7 + $0x56c] sm:$0xff]
    %v492 = vld [vmem:[#allocation7 + $0x574] sm:$0xf]
    %v493 = vld [vmem:[%s6] sm:$0xff]
    %v495 = vperm.slane %v493, 0
    %v496 = vperm.slane %v493, 1
    %v497 = vperm.slane %v493, 2
    %v498 = vperm.slane %v493, 3
    %v499 = vperm.slane %v493, 4
    %v500 = vperm.slane %v493, 5
    %v501 = vperm.slane %v493, 6
    %v709 = vunpack.c.l.b16 %v293
    %v710 = vunpack.c.h.b16 %v293
    %v711 = vunpack.c.l.b16 %v294
    %v712 = vunpack.c.h.b16 %v294
    %v713 = vunpack.c.l.b16 %v295
    %v714 = vunpack.c.h.b16 %v295
    %v715 = vunpack.c.l.b16 %v296
    %v716 = vunpack.c.l.b16 %v297
    %v717 = vunpack.c.h.b16 %v297
    %v718 = vunpack.c.l.b16 %v298
    %v719 = vunpack.c.h.b16 %v298
    %v720 = vunpack.c.l.b16 %v299
    %v721 = vunpack.c.h.b16 %v299
    %v722 = vunpack.c.l.b16 %v300
    %v723 = vunpack.c.l.b16 %v301
    %v724 = vunpack.c.h.b16 %v301
    %v725 = vunpack.c.l.b16 %v302
    %v726 = vunpack.c.h.b16 %v302
    %v727 = vunpack.c.l.b16 %v303
    %v728 = vunpack.c.h.b16 %v303
    %v729 = vunpack.c.l.b16 %v304
    %v730 = vunpack.c.l.b16 %v305
    %v731 = vunpack.c.h.b16 %v305
    %v732 = vunpack.c.l.b16 %v306
    %v733 = vunpack.c.h.b16 %v306
    %v734 = vunpack.c.l.b16 %v307
    %v735 = vunpack.c.h.b16 %v307
    %v736 = vunpack.c.l.b16 %v308
    %v737 = vunpack.c.l.b16 %v309
    %v738 = vunpack.c.h.b16 %v309
    %v739 = vunpack.c.l.b16 %v310
    %v740 = vunpack.c.h.b16 %v310
    %v741 = vunpack.c.l.b16 %v311
    %v742 = vunpack.c.h.b16 %v311
    %v743 = vunpack.c.l.b16 %v312
    %v744 = vunpack.c.l.b16 %v313
    %v745 = vunpack.c.h.b16 %v313
    %v746 = vunpack.c.l.b16 %v314
    %v747 = vunpack.c.h.b16 %v314
    %v748 = vunpack.c.l.b16 %v315
    %v749 = vunpack.c.h.b16 %v315
    %v750 = vunpack.c.l.b16 %v316
    %v751 = vunpack.c.l.b16 %v317
    %v752 = vunpack.c.h.b16 %v317
    %v753 = vunpack.c.l.b16 %v318
    %v754 = vunpack.c.h.b16 %v318
    %v755 = vunpack.c.l.b16 %v319
    %v756 = vunpack.c.h.b16 %v319
    %v757 = vunpack.c.l.b16 %v320
    %v758 = vunpack.c.l.b16 %v321
    %v759 = vunpack.c.h.b16 %v321
    %v760 = vunpack.c.l.b16 %v322
    %v761 = vunpack.c.h.b16 %v322
    %v762 = vunpack.c.l.b16 %v323
    %v763 = vunpack.c.h.b16 %v323
    %v764 = vunpack.c.l.b16 %v324
    %v765 = vunpack.c.l.b16 %v325
    %v766 = vunpack.c.h.b16 %v325
    %v767 = vunpack.c.l.b16 %v326
    %v768 = vunpack.c.h.b16 %v326
    %v769 = vunpack.c.l.b16 %v327
    %v770 = vunpack.c.h.b16 %v327
    %v771 = vunpack.c.l.b16 %v328
    %v772 = vunpack.c.l.b16 %v329
    %v773 = vunpack.c.h.b16 %v329
    %v774 = vunpack.c.l.b16 %v330
    %v775 = vunpack.c.h.b16 %v330
    %v776 = vunpack.c.l.b16 %v331
    %v777 = vunpack.c.h.b16 %v331
    %v778 = vunpack.c.l.b16 %v332
    %v779 = vunpack.c.l.b16 %v333
    %v780 = vunpack.c.h.b16 %v333
    %v781 = vunpack.c.l.b16 %v334
    %v782 = vunpack.c.h.b16 %v334
    %v783 = vunpack.c.l.b16 %v335
    %v784 = vunpack.c.h.b16 %v335
    %v785 = vunpack.c.l.b16 %v336
    %v786 = vunpack.c.l.b16 %v337
    %v787 = vunpack.c.h.b16 %v337
    %v788 = vunpack.c.l.b16 %v338
    %v789 = vunpack.c.h.b16 %v338
    %v790 = vunpack.c.l.b16 %v339
    %v791 = vunpack.c.h.b16 %v339
    %v792 = vunpack.c.l.b16 %v340
    %v793 = vunpack.c.l.b16 %v341
    %v794 = vunpack.c.h.b16 %v341
    %v795 = vunpack.c.l.b16 %v342
    %v796 = vunpack.c.h.b16 %v342
    %v797 = vunpack.c.l.b16 %v343
    %v798 = vunpack.c.h.b16 %v343
    %v799 = vunpack.c.l.b16 %v344
    %v800 = vunpack.c.l.b16 %v345
    %v801 = vunpack.c.h.b16 %v345
    %v802 = vunpack.c.l.b16 %v346
    %v803 = vunpack.c.h.b16 %v346
    %v804 = vunpack.c.l.b16 %v347
    %v805 = vunpack.c.h.b16 %v347
    %v806 = vunpack.c.l.b16 %v348
    %v807 = vunpack.c.l.b16 %v349
    %v808 = vunpack.c.h.b16 %v349
    %v809 = vunpack.c.l.b16 %v350
    %v810 = vunpack.c.h.b16 %v350
    %v811 = vunpack.c.l.b16 %v351
    %v812 = vunpack.c.h.b16 %v351
    %v813 = vunpack.c.l.b16 %v352
    %v814 = vunpack.c.l.b16 %v353
    %v815 = vunpack.c.h.b16 %v353
    %v816 = vunpack.c.l.b16 %v354
    %v817 = vunpack.c.h.b16 %v354
    %v818 = vunpack.c.l.b16 %v355
    %v819 = vunpack.c.h.b16 %v355
    %v820 = vunpack.c.l.b16 %v356
    %v821 = vunpack.c.l.b16 %v357
    %v822 = vunpack.c.h.b16 %v357
    %v823 = vunpack.c.l.b16 %v358
    %v824 = vunpack.c.h.b16 %v358
    %v825 = vunpack.c.l.b16 %v359
    %v826 = vunpack.c.h.b16 %v359
    %v827 = vunpack.c.l.b16 %v360
    %v828 = vunpack.c.l.b16 %v361
    %v829 = vunpack.c.h.b16 %v361
    %v830 = vunpack.c.l.b16 %v362
    %v831 = vunpack.c.h.b16 %v362
    %v832 = vunpack.c.l.b16 %v363
    %v833 = vunpack.c.h.b16 %v363
    %v834 = vunpack.c.l.b16 %v364
    %v835 = vunpack.c.l.b16 %v365
    %v836 = vunpack.c.h.b16 %v365
    %v837 = vunpack.c.l.b16 %v366
    %v838 = vunpack.c.h.b16 %v366
    %v839 = vunpack.c.l.b16 %v367
    %v840 = vunpack.c.h.b16 %v367
    %v841 = vunpack.c.l.b16 %v368
    %v842 = vunpack.c.l.b16 %v369
    %v843 = vunpack.c.h.b16 %v369
    %v844 = vunpack.c.l.b16 %v370
    %v845 = vunpack.c.h.b16 %v370
    %v846 = vunpack.c.l.b16 %v371
    %v847 = vunpack.c.h.b16 %v371
    %v848 = vunpack.c.l.b16 %v372
    %v849 = vunpack.c.l.b16 %v373
    %v850 = vunpack.c.h.b16 %v373
    %v851 = vunpack.c.l.b16 %v374
    %v852 = vunpack.c.h.b16 %v374
    %v853 = vunpack.c.l.b16 %v375
    %v854 = vunpack.c.h.b16 %v375
    %v855 = vunpack.c.l.b16 %v376
    %v856 = vunpack.c.l.b16 %v377
    %v857 = vunpack.c.h.b16 %v377
    %v858 = vunpack.c.l.b16 %v378
    %v859 = vunpack.c.h.b16 %v378
    %v860 = vunpack.c.l.b16 %v379
    %v861 = vunpack.c.h.b16 %v379
    %v862 = vunpack.c.l.b16 %v380
    %v863 = vunpack.c.l.b16 %v381
    %v864 = vunpack.c.h.b16 %v381
    %v865 = vunpack.c.l.b16 %v382
    %v866 = vunpack.c.h.b16 %v382
    %v867 = vunpack.c.l.b16 %v383
    %v868 = vunpack.c.h.b16 %v383
    %v869 = vunpack.c.l.b16 %v384
    %v870 = vunpack.c.l.b16 %v385
    %v871 = vunpack.c.h.b16 %v385
    %v872 = vunpack.c.l.b16 %v386
    %v873 = vunpack.c.h.b16 %v386
    %v874 = vunpack.c.l.b16 %v387
    %v875 = vunpack.c.h.b16 %v387
    %v876 = vunpack.c.l.b16 %v388
    %v877 = vunpack.c.l.b16 %v389
    %v878 = vunpack.c.h.b16 %v389
    %v879 = vunpack.c.l.b16 %v390
    %v880 = vunpack.c.h.b16 %v390
    %v881 = vunpack.c.l.b16 %v391
    %v882 = vunpack.c.h.b16 %v391
    %v883 = vunpack.c.l.b16 %v392
    %v884 = vunpack.c.l.b16 %v393
    %v885 = vunpack.c.h.b16 %v393
    %v886 = vunpack.c.l.b16 %v394
    %v887 = vunpack.c.h.b16 %v394
    %v888 = vunpack.c.l.b16 %v395
    %v889 = vunpack.c.h.b16 %v395
    %v890 = vunpack.c.l.b16 %v396
    %v891 = vunpack.c.l.b16 %v397
    %v892 = vunpack.c.h.b16 %v397
    %v893 = vunpack.c.l.b16 %v398
    %v894 = vunpack.c.h.b16 %v398
    %v895 = vunpack.c.l.b16 %v399
    %v896 = vunpack.c.h.b16 %v399
    %v897 = vunpack.c.l.b16 %v400
    %v898 = vunpack.c.l.b16 %v401
    %v899 = vunpack.c.h.b16 %v401
    %v900 = vunpack.c.l.b16 %v402
    %v901 = vunpack.c.h.b16 %v402
    %v902 = vunpack.c.l.b16 %v403
    %v903 = vunpack.c.h.b16 %v403
    %v904 = vunpack.c.l.b16 %v404
    %v905 = vunpack.c.l.b16 %v405
    %v906 = vunpack.c.h.b16 %v405
    %v907 = vunpack.c.l.b16 %v406
    %v908 = vunpack.c.h.b16 %v406
    %v909 = vunpack.c.l.b16 %v407
    %v910 = vunpack.c.h.b16 %v407
    %v911 = vunpack.c.l.b16 %v408
    %v912 = vunpack.c.l.b16 %v409
    %v913 = vunpack.c.h.b16 %v409
    %v914 = vunpack.c.l.b16 %v410
    %v915 = vunpack.c.h.b16 %v410
    %v916 = vunpack.c.l.b16 %v411
    %v917 = vunpack.c.h.b16 %v411
    %v918 = vunpack.c.l.b16 %v412
    %v919 = vunpack.c.l.b16 %v413
    %v920 = vunpack.c.h.b16 %v413
    %v921 = vunpack.c.l.b16 %v414
    %v922 = vunpack.c.h.b16 %v414
    %v923 = vunpack.c.l.b16 %v415
    %v924 = vunpack.c.h.b16 %v415
    %v925 = vunpack.c.l.b16 %v416
    %v926 = vunpack.c.l.b16 %v417
    %v927 = vunpack.c.h.b16 %v417
    %v928 = vunpack.c.l.b16 %v418
    %v929 = vunpack.c.h.b16 %v418
    %v930 = vunpack.c.l.b16 %v419
    %v931 = vunpack.c.h.b16 %v419
    %v932 = vunpack.c.l.b16 %v420
    %v933 = vunpack.c.l.b16 %v421
    %v934 = vunpack.c.h.b16 %v421
    %v935 = vunpack.c.l.b16 %v422
    %v936 = vunpack.c.h.b16 %v422
    %v937 = vunpack.c.l.b16 %v423
    %v938 = vunpack.c.h.b16 %v423
    %v939 = vunpack.c.l.b16 %v424
    %v940 = vunpack.c.l.b16 %v425
    %v941 = vunpack.c.h.b16 %v425
    %v942 = vunpack.c.l.b16 %v426
    %v943 = vunpack.c.h.b16 %v426
    %v944 = vunpack.c.l.b16 %v427
    %v945 = vunpack.c.h.b16 %v427
    %v946 = vunpack.c.l.b16 %v428
    %v947 = vunpack.c.l.b16 %v429
    %v948 = vunpack.c.h.b16 %v429
    %v949 = vunpack.c.l.b16 %v430
    %v950 = vunpack.c.h.b16 %v430
    %v951 = vunpack.c.l.b16 %v431
    %v952 = vunpack.c.h.b16 %v431
    %v953 = vunpack.c.l.b16 %v432
    %v954 = vunpack.c.l.b16 %v433
    %v955 = vunpack.c.h.b16 %v433
    %v956 = vunpack.c.l.b16 %v434
    %v957 = vunpack.c.h.b16 %v434
    %v958 = vunpack.c.l.b16 %v435
    %v959 = vunpack.c.h.b16 %v435
    %v960 = vunpack.c.l.b16 %v436
    %v961 = vunpack.c.l.b16 %v437
    %v962 = vunpack.c.h.b16 %v437
    %v963 = vunpack.c.l.b16 %v438
    %v964 = vunpack.c.h.b16 %v438
    %v965 = vunpack.c.l.b16 %v439
    %v966 = vunpack.c.h.b16 %v439
    %v967 = vunpack.c.l.b16 %v440
    %v968 = vunpack.c.l.b16 %v441
    %v969 = vunpack.c.h.b16 %v441
    %v970 = vunpack.c.l.b16 %v442
    %v971 = vunpack.c.h.b16 %v442
    %v972 = vunpack.c.l.b16 %v443
    %v973 = vunpack.c.h.b16 %v443
    %v974 = vunpack.c.l.b16 %v444
    %v975 = vunpack.c.l.b16 %v445
    %v976 = vunpack.c.h.b16 %v445
    %v977 = vunpack.c.l.b16 %v446
    %v978 = vunpack.c.h.b16 %v446
    %v979 = vunpack.c.l.b16 %v447
    %v980 = vunpack.c.h.b16 %v447
    %v981 = vunpack.c.l.b16 %v448
    %v982 = vunpack.c.l.b16 %v449
    %v983 = vunpack.c.h.b16 %v449
    %v984 = vunpack.c.l.b16 %v450
    %v985 = vunpack.c.h.b16 %v450
    %v986 = vunpack.c.l.b16 %v451
    %v987 = vunpack.c.h.b16 %v451
    %v988 = vunpack.c.l.b16 %v452
    %v989 = vunpack.c.l.b16 %v453
    %v990 = vunpack.c.h.b16 %v453
    %v991 = vunpack.c.l.b16 %v454
    %v992 = vunpack.c.h.b16 %v454
    %v993 = vunpack.c.l.b16 %v455
    %v994 = vunpack.c.h.b16 %v455
    %v995 = vunpack.c.l.b16 %v456
    %v996 = vunpack.c.l.b16 %v457
    %v997 = vunpack.c.h.b16 %v457
    %v998 = vunpack.c.l.b16 %v458
    %v999 = vunpack.c.h.b16 %v458
    %v1000 = vunpack.c.l.b16 %v459
    %v1001 = vunpack.c.h.b16 %v459
    %v1002 = vunpack.c.l.b16 %v460
    %v1003 = vunpack.c.l.b16 %v461
    %v1004 = vunpack.c.h.b16 %v461
    %v1005 = vunpack.c.l.b16 %v462
    %v1006 = vunpack.c.h.b16 %v462
    %v1007 = vunpack.c.l.b16 %v463
    %v1008 = vunpack.c.h.b16 %v463
    %v1009 = vunpack.c.l.b16 %v464
    %v1010 = vunpack.c.l.b16 %v465
    %v1011 = vunpack.c.h.b16 %v465
    %v1012 = vunpack.c.l.b16 %v466
    %v1013 = vunpack.c.h.b16 %v466
    %v1014 = vunpack.c.l.b16 %v467
    %v1015 = vunpack.c.h.b16 %v467
    %v1016 = vunpack.c.l.b16 %v468
    %v1017 = vunpack.c.l.b16 %v469
    %v1018 = vunpack.c.h.b16 %v469
    %v1019 = vunpack.c.l.b16 %v470
    %v1020 = vunpack.c.h.b16 %v470
    %v1021 = vunpack.c.l.b16 %v471
    %v1022 = vunpack.c.h.b16 %v471
    %v1023 = vunpack.c.l.b16 %v472
    %v1024 = vunpack.c.l.b16 %v473
    %v1025 = vunpack.c.h.b16 %v473
    %v1026 = vunpack.c.l.b16 %v474
    %v1027 = vunpack.c.h.b16 %v474
    %v1028 = vunpack.c.l.b16 %v475
    %v1029 = vunpack.c.h.b16 %v475
    %v1030 = vunpack.c.l.b16 %v476
    %v1031 = vunpack.c.l.b16 %v477
    %v1032 = vunpack.c.h.b16 %v477
    %v1033 = vunpack.c.l.b16 %v478
    %v1034 = vunpack.c.h.b16 %v478
    %v1035 = vunpack.c.l.b16 %v479
    %v1036 = vunpack.c.h.b16 %v479
    %v1037 = vunpack.c.l.b16 %v480
    %v1038 = vunpack.c.l.b16 %v481
    %v1039 = vunpack.c.h.b16 %v481
    %v1040 = vunpack.c.l.b16 %v482
    %v1041 = vunpack.c.h.b16 %v482
    %v1042 = vunpack.c.l.b16 %v483
    %v1043 = vunpack.c.h.b16 %v483
    %v1044 = vunpack.c.l.b16 %v484
    %v1045 = vunpack.c.l.b16 %v485
    %v1046 = vunpack.c.h.b16 %v485
    %v1047 = vunpack.c.l.b16 %v486
    %v1048 = vunpack.c.h.b16 %v486
    %v1049 = vunpack.c.l.b16 %v487
    %v1050 = vunpack.c.h.b16 %v487
    %v1051 = vunpack.c.l.b16 %v488
    %v1052 = vunpack.c.l.b16 %v489
    %v1053 = vunpack.c.h.b16 %v489
    %v1054 = vunpack.c.l.b16 %v490
    %v1055 = vunpack.c.h.b16 %v490
    %v1056 = vunpack.c.l.b16 %v491
    %v1057 = vunpack.c.h.b16 %v491
    %v1058 = vunpack.c.l.b16 %v492
    %v1059 = vpack.c.b16 %v716, %v709
    %v1060 = vpack.c.b16 %v717, %v710
    %v1061 = vpack.c.b16 %v718, %v711
    %v1062 = vpack.c.b16 %v719, %v712
    %v1063 = vpack.c.b16 %v720, %v713
    %v1064 = vpack.c.b16 %v721, %v714
    %v1065 = vpack.c.b16 %v722, %v715
    %v1066 = vpack.c.b16 %v730, %v723
    %v1067 = vpack.c.b16 %v731, %v724
    %v1068 = vpack.c.b16 %v732, %v725
    %v1069 = vpack.c.b16 %v733, %v726
    %v1070 = vpack.c.b16 %v734, %v727
    %v1071 = vpack.c.b16 %v735, %v728
    %v1072 = vpack.c.b16 %v736, %v729
    %v1073 = vpack.c.b16 %v744, %v737
    %v1074 = vpack.c.b16 %v745, %v738
    %v1075 = vpack.c.b16 %v746, %v739
    %v1076 = vpack.c.b16 %v747, %v740
    %v1077 = vpack.c.b16 %v748, %v741
    %v1078 = vpack.c.b16 %v749, %v742
    %v1079 = vpack.c.b16 %v750, %v743
    %v1080 = vpack.c.b16 %v758, %v751
    %v1081 = vpack.c.b16 %v759, %v752
    %v1082 = vpack.c.b16 %v760, %v753
    %v1083 = vpack.c.b16 %v761, %v754
    %v1084 = vpack.c.b16 %v762, %v755
    %v1085 = vpack.c.b16 %v763, %v756
    %v1086 = vpack.c.b16 %v764, %v757
    %v1087 = vpack.c.b16 %v772, %v765
    %v1088 = vpack.c.b16 %v773, %v766
    %v1089 = vpack.c.b16 %v774, %v767
    %v1090 = vpack.c.b16 %v775, %v768
    %v1091 = vpack.c.b16 %v776, %v769
    %v1092 = vpack.c.b16 %v777, %v770
    %v1093 = vpack.c.b16 %v778, %v771
    %v1094 = vpack.c.b16 %v786, %v779
    %v1095 = vpack.c.b16 %v787, %v780
    %v1096 = vpack.c.b16 %v788, %v781
    %v1097 = vpack.c.b16 %v789, %v782
    %v1098 = vpack.c.b16 %v790, %v783
    %v1099 = vpack.c.b16 %v791, %v784
    %v1100 = vpack.c.b16 %v792, %v785
    %v1101 = vpack.c.b16 %v800, %v793
    %v1102 = vpack.c.b16 %v801, %v794
    %v1103 = vpack.c.b16 %v802, %v795
    %v1104 = vpack.c.b16 %v803, %v796
    %v1105 = vpack.c.b16 %v804, %v797
    %v1106 = vpack.c.b16 %v805, %v798
    %v1107 = vpack.c.b16 %v806, %v799
    %v1108 = vpack.c.b16 %v814, %v807
    %v1109 = vpack.c.b16 %v815, %v808
    %v1110 = vpack.c.b16 %v816, %v809
    %v1111 = vpack.c.b16 %v817, %v810
    %v1112 = vpack.c.b16 %v818, %v811
    %v1113 = vpack.c.b16 %v819, %v812
    %v1114 = vpack.c.b16 %v820, %v813
    %v1115 = vpack.c.b16 %v828, %v821
    %v1116 = vpack.c.b16 %v829, %v822
    %v1117 = vpack.c.b16 %v830, %v823
    %v1118 = vpack.c.b16 %v831, %v824
    %v1119 = vpack.c.b16 %v832, %v825
    %v1120 = vpack.c.b16 %v833, %v826
    %v1121 = vpack.c.b16 %v834, %v827
    %v1122 = vpack.c.b16 %v842, %v835
    %v1123 = vpack.c.b16 %v843, %v836
    %v1124 = vpack.c.b16 %v844, %v837
    %v1125 = vpack.c.b16 %v845, %v838
    %v1126 = vpack.c.b16 %v846, %v839
    %v1127 = vpack.c.b16 %v847, %v840
    %v1128 = vpack.c.b16 %v848, %v841
    %v1129 = vpack.c.b16 %v856, %v849
    %v1130 = vpack.c.b16 %v857, %v850
    %v1131 = vpack.c.b16 %v858, %v851
    %v1132 = vpack.c.b16 %v859, %v852
    %v1133 = vpack.c.b16 %v860, %v853
    %v1134 = vpack.c.b16 %v861, %v854
    %v1135 = vpack.c.b16 %v862, %v855
    %v1136 = vpack.c.b16 %v870, %v863
    %v1137 = vpack.c.b16 %v871, %v864
    %v1138 = vpack.c.b16 %v872, %v865
    %v1139 = vpack.c.b16 %v873, %v866
    %v1140 = vpack.c.b16 %v874, %v867
    %v1141 = vpack.c.b16 %v875, %v868
    %v1142 = vpack.c.b16 %v876, %v869
    %v1143 = vpack.c.b16 %v884, %v877
    %v1144 = vpack.c.b16 %v885, %v878
    %v1145 = vpack.c.b16 %v886, %v879
    %v1146 = vpack.c.b16 %v887, %v880
    %v1147 = vpack.c.b16 %v888, %v881
    %v1148 = vpack.c.b16 %v889, %v882
    %v1149 = vpack.c.b16 %v890, %v883
    %v1150 = vpack.c.b16 %v898, %v891
    %v1151 = vpack.c.b16 %v899, %v892
    %v1152 = vpack.c.b16 %v900, %v893
    %v1153 = vpack.c.b16 %v901, %v894
    %v1154 = vpack.c.b16 %v902, %v895
    %v1155 = vpack.c.b16 %v903, %v896
    %v1156 = vpack.c.b16 %v904, %v897
    %v1157 = vpack.c.b16 %v912, %v905
    %v1158 = vpack.c.b16 %v913, %v906
    %v1159 = vpack.c.b16 %v914, %v907
    %v1160 = vpack.c.b16 %v915, %v908
    %v1161 = vpack.c.b16 %v916, %v909
    %v1162 = vpack.c.b16 %v917, %v910
    %v1163 = vpack.c.b16 %v918, %v911
    %v1164 = vpack.c.b16 %v926, %v919
    %v1165 = vpack.c.b16 %v927, %v920
    %v1166 = vpack.c.b16 %v928, %v921
    %v1167 = vpack.c.b16 %v929, %v922
    %v1168 = vpack.c.b16 %v930, %v923
    %v1169 = vpack.c.b16 %v931, %v924
    %v1170 = vpack.c.b16 %v932, %v925
    %v1171 = vpack.c.b16 %v940, %v933
    %v1172 = vpack.c.b16 %v941, %v934
    %v1173 = vpack.c.b16 %v942, %v935
    %v1174 = vpack.c.b16 %v943, %v936
    %v1175 = vpack.c.b16 %v944, %v937
    %v1176 = vpack.c.b16 %v945, %v938
    %v1177 = vpack.c.b16 %v946, %v939
    %v1178 = vpack.c.b16 %v954, %v947
    %v1179 = vpack.c.b16 %v955, %v948
    %v1180 = vpack.c.b16 %v956, %v949
    %v1181 = vpack.c.b16 %v957, %v950
    %v1182 = vpack.c.b16 %v958, %v951
    %v1183 = vpack.c.b16 %v959, %v952
    %v1184 = vpack.c.b16 %v960, %v953
    %v1185 = vpack.c.b16 %v968, %v961
    %v1186 = vpack.c.b16 %v969, %v962
    %v1187 = vpack.c.b16 %v970, %v963
    %v1188 = vpack.c.b16 %v971, %v964
    %v1189 = vpack.c.b16 %v972, %v965
    %v1190 = vpack.c.b16 %v973, %v966
    %v1191 = vpack.c.b16 %v974, %v967
    %v1192 = vpack.c.b16 %v982, %v975
    %v1193 = vpack.c.b16 %v983, %v976
    %v1194 = vpack.c.b16 %v984, %v977
    %v1195 = vpack.c.b16 %v985, %v978
    %v1196 = vpack.c.b16 %v986, %v979
    %v1197 = vpack.c.b16 %v987, %v980
    %v1198 = vpack.c.b16 %v988, %v981
    %v1199 = vpack.c.b16 %v996, %v989
    %v1200 = vpack.c.b16 %v997, %v990
    %v1201 = vpack.c.b16 %v998, %v991
    %v1202 = vpack.c.b16 %v999, %v992
    %v1203 = vpack.c.b16 %v1000, %v993
    %v1204 = vpack.c.b16 %v1001, %v994
    %v1205 = vpack.c.b16 %v1002, %v995
    %v1206 = vpack.c.b16 %v1010, %v1003
    %v1207 = vpack.c.b16 %v1011, %v1004
    %v1208 = vpack.c.b16 %v1012, %v1005
    %v1209 = vpack.c.b16 %v1013, %v1006
    %v1210 = vpack.c.b16 %v1014, %v1007
    %v1211 = vpack.c.b16 %v1015, %v1008
    %v1212 = vpack.c.b16 %v1016, %v1009
    %v1213 = vpack.c.b16 %v1024, %v1017
    %v1214 = vpack.c.b16 %v1025, %v1018
    %v1215 = vpack.c.b16 %v1026, %v1019
    %v1216 = vpack.c.b16 %v1027, %v1020
    %v1217 = vpack.c.b16 %v1028, %v1021
    %v1218 = vpack.c.b16 %v1029, %v1022
    %v1219 = vpack.c.b16 %v1030, %v1023
    %v1220 = vpack.c.b16 %v1038, %v1031
    %v1221 = vpack.c.b16 %v1039, %v1032
    %v1222 = vpack.c.b16 %v1040, %v1033
    %v1223 = vpack.c.b16 %v1041, %v1034
    %v1224 = vpack.c.b16 %v1042, %v1035
    %v1225 = vpack.c.b16 %v1043, %v1036
    %v1226 = vpack.c.b16 %v1044, %v1037
    %v1227 = vpack.c.b16 %v1052, %v1045
    %v1228 = vpack.c.b16 %v1053, %v1046
    %v1229 = vpack.c.b16 %v1054, %v1047
    %v1230 = vpack.c.b16 %v1055, %v1048
    %v1231 = vpack.c.b16 %v1056, %v1049
    %v1232 = vpack.c.b16 %v1057, %v1050
    %v1233 = vpack.c.b16 %v1058, %v1051
    %vm1409 = vcmask 130048
    %v1411 = vsel %vm1409, %v292, 0
    %1413 = vmatpush.bf16.msra.mxu0 %v1108
    %1414 = vmatpush.bf16.msra.mxu0 %v1101
    %1415 = vmatpush.bf16.msra.mxu0 %v1094
    %1416 = vmatpush.bf16.msra.mxu0 %v1087
    %1417 = vmatpush.bf16.msra.mxu0 %v1080
    %1418 = vmatpush.bf16.msra.mxu0 %v1073
    %1419 = vmatpush.bf16.msra.mxu0 %v1066
    %1420 = vmatpush.bf16.msra.mxu0 %v1059
    %1421 = vmatmul.bf16.gmra.mxu0 %v289
    %v1422 = vpop.f32.mrf.mxu0
    %v1423 = vadd.f32 %v495, %v1422
    %v1424 = vpop.f32.mrf.mxu0
    %1425 = vdwg.mxu0
    %1426 = vmatpush.bf16.msra.mxu0 %v1164
    %1427 = vmatpush.bf16.msra.mxu0 %v1157
    %1428 = vmatpush.bf16.msra.mxu0 %v1150
    %1429 = vmatpush.bf16.msra.mxu0 %v1143
    %1430 = vmatpush.bf16.msra.mxu0 %v1136
    %1431 = vmatpush.bf16.msra.mxu0 %v1129
    %1432 = vmatpush.bf16.msra.mxu0 %v1122
    %1433 = vmatpush.bf16.msra.mxu0 %v1115
    %1434 = vmatmul.bf16.gmra.mxu0 %v290
    %v1435 = vpop.f32.mrf.mxu0
    %v1436 = vadd.f32 %v1423, %v1435
    %v1437 = vpop.f32.mrf.mxu0
    %1438 = vdwg.mxu0
    %1439 = vmatpush.bf16.msra.mxu0 %v1220
    %1440 = vmatpush.bf16.msra.mxu0 %v1213
    %1441 = vmatpush.bf16.msra.mxu0 %v1206
    %1442 = vmatpush.bf16.msra.mxu0 %v1199
    %1443 = vmatpush.bf16.msra.mxu0 %v1192
    %1444 = vmatpush.bf16.msra.mxu0 %v1185
    %1445 = vmatpush.bf16.msra.mxu0 %v1178
    %1446 = vmatpush.bf16.msra.mxu0 %v1171
    %1447 = vmatmul.bf16.gmra.mxu0 %v291
    %v1448 = vpop.f32.mrf.mxu0
    %v1449 = vadd.f32 %v1436, %v1448
    %v1450 = vpop.f32.mrf.mxu0
    %1451 = vdwg.mxu0
    %1452 = vmatpush.bf16.msra.mxu0 0
    %1453 = vmatpush.bf16.msra.mxu0 0
    %1454 = vmatpush.bf16.msra.mxu0 0
    %1455 = vmatpush.bf16.msra.mxu0 0
    %1456 = vmatpush.bf16.msra.mxu0 0
    %1457 = vmatpush.bf16.msra.mxu0 0
    %1458 = vmatpush.bf16.msra.mxu0 0
    %1459 = vmatpush.bf16.msra.mxu0 %v1227
    %1460 = vmatmul.bf16.gmra.mxu0 %v1411
    %v1461 = vpop.f32.mrf.mxu0
    %v1462 = vadd.f32 %v1449, %v1461
    %v1463 = vpop.f32.mrf.mxu0
    %1464 = vdwg.mxu0
    %1465 = vmatpush.bf16.msra.mxu0 %v1109
    %1466 = vmatpush.bf16.msra.mxu0 %v1102
    %1467 = vmatpush.bf16.msra.mxu0 %v1095
    %1468 = vmatpush.bf16.msra.mxu0 %v1088
    %1469 = vmatpush.bf16.msra.mxu0 %v1081
    %1470 = vmatpush.bf16.msra.mxu0 %v1074
    %1471 = vmatpush.bf16.msra.mxu0 %v1067
    %1472 = vmatpush.bf16.msra.mxu0 %v1060
    %1473 = vmatmul.bf16.gmra.mxu0 %v289
    %v1474 = vpop.f32.mrf.mxu0
    %v1475 = vadd.f32 %v496, %v1474
    %v1476 = vpop.f32.mrf.mxu0
    %1477 = vdwg.mxu0
    %1478 = vmatpush.bf16.msra.mxu0 %v1165
    %1479 = vmatpush.bf16.msra.mxu0 %v1158
    %1480 = vmatpush.bf16.msra.mxu0 %v1151
    %1481 = vmatpush.bf16.msra.mxu0 %v1144
    %1482 = vmatpush.bf16.msra.mxu0 %v1137
    %1483 = vmatpush.bf16.msra.mxu0 %v1130
    %1484 = vmatpush.bf16.msra.mxu0 %v1123
    %1485 = vmatpush.bf16.msra.mxu0 %v1116
    %1486 = vmatmul.bf16.gmra.mxu0 %v290
    %v1487 = vpop.f32.mrf.mxu0
    %v1488 = vadd.f32 %v1475, %v1487
    %v1489 = vpop.f32.mrf.mxu0
    %1490 = vdwg.mxu0
    %1491 = vmatpush.bf16.msra.mxu0 %v1221
    %1492 = vmatpush.bf16.msra.mxu0 %v1214
    %1493 = vmatpush.bf16.msra.mxu0 %v1207
    %1494 = vmatpush.bf16.msra.mxu0 %v1200
    %1495 = vmatpush.bf16.msra.mxu0 %v1193
    %1496 = vmatpush.bf16.msra.mxu0 %v1186
    %1497 = vmatpush.bf16.msra.mxu0 %v1179
    %1498 = vmatpush.bf16.msra.mxu0 %v1172
    %1499 = vmatmul.bf16.gmra.mxu0 %v291
    %v1500 = vpop.f32.mrf.mxu0
    %v1501 = vadd.f32 %v1488, %v1500
    %v1502 = vpop.f32.mrf.mxu0
    %1503 = vdwg.mxu0
    %1504 = vmatpush.bf16.msra.mxu0 0
    %1505 = vmatpush.bf16.msra.mxu0 0
    %1506 = vmatpush.bf16.msra.mxu0 0
    %1507 = vmatpush.bf16.msra.mxu0 0
    %1508 = vmatpush.bf16.msra.mxu0 0
    %1509 = vmatpush.bf16.msra.mxu0 0
    %1510 = vmatpush.bf16.msra.mxu0 0
    %1511 = vmatpush.bf16.msra.mxu0 %v1228
    %1512 = vmatmul.bf16.gmra.mxu0 %v1411
    %v1513 = vpop.f32.mrf.mxu0
    %v1514 = vadd.f32 %v1501, %v1513
    %v1515 = vpop.f32.mrf.mxu0
    %1516 = vdwg.mxu0
    %1517 = vmatpush.bf16.msra.mxu0 %v1110
    %1518 = vmatpush.bf16.msra.mxu0 %v1103
    %1519 = vmatpush.bf16.msra.mxu0 %v1096
    %1520 = vmatpush.bf16.msra.mxu0 %v1089
    %1521 = vmatpush.bf16.msra.mxu0 %v1082
    %1522 = vmatpush.bf16.msra.mxu0 %v1075
    %1523 = vmatpush.bf16.msra.mxu0 %v1068
    %1524 = vmatpush.bf16.msra.mxu0 %v1061
    %1525 = vmatmul.bf16.gmra.mxu0 %v289
    %v1526 = vpop.f32.mrf.mxu0
    %v1527 = vadd.f32 %v497, %v1526
    %v1528 = vpop.f32.mrf.mxu0
    %1529 = vdwg.mxu0
    %1530 = vmatpush.bf16.msra.mxu0 %v1166
    %1531 = vmatpush.bf16.msra.mxu0 %v1159
    %1532 = vmatpush.bf16.msra.mxu0 %v1152
    %1533 = vmatpush.bf16.msra.mxu0 %v1145
    %1534 = vmatpush.bf16.msra.mxu0 %v1138
    %1535 = vmatpush.bf16.msra.mxu0 %v1131
    %1536 = vmatpush.bf16.msra.mxu0 %v1124
    %1537 = vmatpush.bf16.msra.mxu0 %v1117
    %1538 = vmatmul.bf16.gmra.mxu0 %v290
    %v1539 = vpop.f32.mrf.mxu0
    %v1540 = vadd.f32 %v1527, %v1539
    %v1541 = vpop.f32.mrf.mxu0
    %1542 = vdwg.mxu0
    %1543 = vmatpush.bf16.msra.mxu0 %v1222
    %1544 = vmatpush.bf16.msra.mxu0 %v1215
    %1545 = vmatpush.bf16.msra.mxu0 %v1208
    %1546 = vmatpush.bf16.msra.mxu0 %v1201
    %1547 = vmatpush.bf16.msra.mxu0 %v1194
    %1548 = vmatpush.bf16.msra.mxu0 %v1187
    %1549 = vmatpush.bf16.msra.mxu0 %v1180
    %1550 = vmatpush.bf16.msra.mxu0 %v1173
    %1551 = vmatmul.bf16.gmra.mxu0 %v291
    %v1552 = vpop.f32.mrf.mxu0
    %v1553 = vadd.f32 %v1540, %v1552
    %v1554 = vpop.f32.mrf.mxu0
    %1555 = vdwg.mxu0
    %1556 = vmatpush.bf16.msra.mxu0 0
    %1557 = vmatpush.bf16.msra.mxu0 0
    %1558 = vmatpush.bf16.msra.mxu0 0
    %1559 = vmatpush.bf16.msra.mxu0 0
    %1560 = vmatpush.bf16.msra.mxu0 0
    %1561 = vmatpush.bf16.msra.mxu0 0
    %1562 = vmatpush.bf16.msra.mxu0 0
    %1563 = vmatpush.bf16.msra.mxu0 %v1229
    %1564 = vmatmul.bf16.gmra.mxu0 %v1411
    %v1565 = vpop.f32.mrf.mxu0
    %v1566 = vadd.f32 %v1553, %v1565
    %v1567 = vpop.f32.mrf.mxu0
    %1568 = vdwg.mxu0
    %1569 = vmatpush.bf16.msra.mxu0 %v1111
    %1570 = vmatpush.bf16.msra.mxu0 %v1104
    %1571 = vmatpush.bf16.msra.mxu0 %v1097
    %1572 = vmatpush.bf16.msra.mxu0 %v1090
    %1573 = vmatpush.bf16.msra.mxu0 %v1083
    %1574 = vmatpush.bf16.msra.mxu0 %v1076
    %1575 = vmatpush.bf16.msra.mxu0 %v1069
    %1576 = vmatpush.bf16.msra.mxu0 %v1062
    %1577 = vmatmul.bf16.gmra.mxu0 %v289
    %v1578 = vpop.f32.mrf.mxu0
    %v1579 = vadd.f32 %v498, %v1578
    %v1580 = vpop.f32.mrf.mxu0
    %1581 = vdwg.mxu0
    %1582 = vmatpush.bf16.msra.mxu0 %v1167
    %1583 = vmatpush.bf16.msra.mxu0 %v1160
    %1584 = vmatpush.bf16.msra.mxu0 %v1153
    %1585 = vmatpush.bf16.msra.mxu0 %v1146
    %1586 = vmatpush.bf16.msra.mxu0 %v1139
    %1587 = vmatpush.bf16.msra.mxu0 %v1132
    %1588 = vmatpush.bf16.msra.mxu0 %v1125
    %1589 = vmatpush.bf16.msra.mxu0 %v1118
    %1590 = vmatmul.bf16.gmra.mxu0 %v290
    %v1591 = vpop.f32.mrf.mxu0
    %v1592 = vadd.f32 %v1579, %v1591
    %v1593 = vpop.f32.mrf.mxu0
    %1594 = vdwg.mxu0
    %1595 = vmatpush.bf16.msra.mxu0 %v1223
    %1596 = vmatpush.bf16.msra.mxu0 %v1216
    %1597 = vmatpush.bf16.msra.mxu0 %v1209
    %1598 = vmatpush.bf16.msra.mxu0 %v1202
    %1599 = vmatpush.bf16.msra.mxu0 %v1195
    %1600 = vmatpush.bf16.msra.mxu0 %v1188
    %1601 = vmatpush.bf16.msra.mxu0 %v1181
    %1602 = vmatpush.bf16.msra.mxu0 %v1174
    %1603 = vmatmul.bf16.gmra.mxu0 %v291
    %v1604 = vpop.f32.mrf.mxu0
    %v1605 = vadd.f32 %v1592, %v1604
    %v1606 = vpop.f32.mrf.mxu0
    %1607 = vdwg.mxu0
    %1608 = vmatpush.bf16.msra.mxu0 0
    %1609 = vmatpush.bf16.msra.mxu0 0
    %1610 = vmatpush.bf16.msra.mxu0 0
    %1611 = vmatpush.bf16.msra.mxu0 0
    %1612 = vmatpush.bf16.msra.mxu0 0
    %1613 = vmatpush.bf16.msra.mxu0 0
    %1614 = vmatpush.bf16.msra.mxu0 0
    %1615 = vmatpush.bf16.msra.mxu0 %v1230
    %1616 = vmatmul.bf16.gmra.mxu0 %v1411
    %v1617 = vpop.f32.mrf.mxu0
    %v1618 = vadd.f32 %v1605, %v1617
    %v1619 = vpop.f32.mrf.mxu0
    %1620 = vdwg.mxu0
    %1621 = vmatpush.bf16.msra.mxu0 %v1112
    %1622 = vmatpush.bf16.msra.mxu0 %v1105
    %1623 = vmatpush.bf16.msra.mxu0 %v1098
    %1624 = vmatpush.bf16.msra.mxu0 %v1091
    %1625 = vmatpush.bf16.msra.mxu0 %v1084
    %1626 = vmatpush.bf16.msra.mxu0 %v1077
    %1627 = vmatpush.bf16.msra.mxu0 %v1070
    %1628 = vmatpush.bf16.msra.mxu0 %v1063
    %1629 = vmatmul.bf16.gmra.mxu0 %v289
    %v1630 = vpop.f32.mrf.mxu0
    %v1631 = vadd.f32 %v499, %v1630
    %v1632 = vpop.f32.mrf.mxu0
    %1633 = vdwg.mxu0
    %1634 = vmatpush.bf16.msra.mxu0 %v1168
    %1635 = vmatpush.bf16.msra.mxu0 %v1161
    %1636 = vmatpush.bf16.msra.mxu0 %v1154
    %1637 = vmatpush.bf16.msra.mxu0 %v1147
    %1638 = vmatpush.bf16.msra.mxu0 %v1140
    %1639 = vmatpush.bf16.msra.mxu0 %v1133
    %1640 = vmatpush.bf16.msra.mxu0 %v1126
    %1641 = vmatpush.bf16.msra.mxu0 %v1119
    %1642 = vmatmul.bf16.gmra.mxu0 %v290
    %v1643 = vpop.f32.mrf.mxu0
    %v1644 = vadd.f32 %v1631, %v1643
    %v1645 = vpop.f32.mrf.mxu0
    %1646 = vdwg.mxu0
    %1647 = vmatpush.bf16.msra.mxu0 %v1224
    %1648 = vmatpush.bf16.msra.mxu0 %v1217
    %1649 = vmatpush.bf16.msra.mxu0 %v1210
    %1650 = vmatpush.bf16.msra.mxu0 %v1203
    %1651 = vmatpush.bf16.msra.mxu0 %v1196
    %1652 = vmatpush.bf16.msra.mxu0 %v1189
    %1653 = vmatpush.bf16.msra.mxu0 %v1182
    %1654 = vmatpush.bf16.msra.mxu0 %v1175
    %1655 = vmatmul.bf16.gmra.mxu0 %v291
    %v1656 = vpop.f32.mrf.mxu0
    %v1657 = vadd.f32 %v1644, %v1656
    %v1658 = vpop.f32.mrf.mxu0
    %1659 = vdwg.mxu0
    %1660 = vmatpush.bf16.msra.mxu0 0
    %1661 = vmatpush.bf16.msra.mxu0 0
    %1662 = vmatpush.bf16.msra.mxu0 0
    %1663 = vmatpush.bf16.msra.mxu0 0
    %1664 = vmatpush.bf16.msra.mxu0 0
    %1665 = vmatpush.bf16.msra.mxu0 0
    %1666 = vmatpush.bf16.msra.mxu0 0
    %1667 = vmatpush.bf16.msra.mxu0 %v1231
    %1668 = vmatmul.bf16.gmra.mxu0 %v1411
    %v1669 = vpop.f32.mrf.mxu0
    %v1670 = vadd.f32 %v1657, %v1669
    %v1671 = vpop.f32.mrf.mxu0
    %1672 = vdwg.mxu0
    %1673 = vmatpush.bf16.msra.mxu0 %v1113
    %1674 = vmatpush.bf16.msra.mxu0 %v1106
    %1675 = vmatpush.bf16.msra.mxu0 %v1099
    %1676 = vmatpush.bf16.msra.mxu0 %v1092
    %1677 = vmatpush.bf16.msra.mxu0 %v1085
    %1678 = vmatpush.bf16.msra.mxu0 %v1078
    %1679 = vmatpush.bf16.msra.mxu0 %v1071
    %1680 = vmatpush.bf16.msra.mxu0 %v1064
    %1681 = vmatmul.bf16.gmra.mxu0 %v289
    %v1682 = vpop.f32.mrf.mxu0
    %v1683 = vadd.f32 %v500, %v1682
    %v1684 = vpop.f32.mrf.mxu0
    %1685 = vdwg.mxu0
    %1686 = vmatpush.bf16.msra.mxu0 %v1169
    %1687 = vmatpush.bf16.msra.mxu0 %v1162
    %1688 = vmatpush.bf16.msra.mxu0 %v1155
    %1689 = vmatpush.bf16.msra.mxu0 %v1148
    %1690 = vmatpush.bf16.msra.mxu0 %v1141
    %1691 = vmatpush.bf16.msra.mxu0 %v1134
    %1692 = vmatpush.bf16.msra.mxu0 %v1127
    %1693 = vmatpush.bf16.msra.mxu0 %v1120
    %1694 = vmatmul.bf16.gmra.mxu0 %v290
    %v1695 = vpop.f32.mrf.mxu0
    %v1696 = vadd.f32 %v1683, %v1695
    %v1697 = vpop.f32.mrf.mxu0
    %1698 = vdwg.mxu0
    %1699 = vmatpush.bf16.msra.mxu0 %v1225
    %1700 = vmatpush.bf16.msra.mxu0 %v1218
    %1701 = vmatpush.bf16.msra.mxu0 %v1211
    %1702 = vmatpush.bf16.msra.mxu0 %v1204
    %1703 = vmatpush.bf16.msra.mxu0 %v1197
    %1704 = vmatpush.bf16.msra.mxu0 %v1190
    %1705 = vmatpush.bf16.msra.mxu0 %v1183
    %1706 = vmatpush.bf16.msra.mxu0 %v1176
    %1707 = vmatmul.bf16.gmra.mxu0 %v291
    %v1708 = vpop.f32.mrf.mxu0
    %v1709 = vadd.f32 %v1696, %v1708
    %v1710 = vpop.f32.mrf.mxu0
    %1711 = vdwg.mxu0
    %1712 = vmatpush.bf16.msra.mxu0 0
    %1713 = vmatpush.bf16.msra.mxu0 0
    %1714 = vmatpush.bf16.msra.mxu0 0
    %1715 = vmatpush.bf16.msra.mxu0 0
    %1716 = vmatpush.bf16.msra.mxu0 0
    %1717 = vmatpush.bf16.msra.mxu0 0
    %1718 = vmatpush.bf16.msra.mxu0 0
    %1719 = vmatpush.bf16.msra.mxu0 %v1232
    %1720 = vmatmul.bf16.gmra.mxu0 %v1411
    %v1721 = vpop.f32.mrf.mxu0
    %v1722 = vadd.f32 %v1709, %v1721
    %v1723 = vpop.f32.mrf.mxu0
    %1724 = vdwg.mxu0
    %1725 = vmatpush.bf16.msra.mxu0 %v1114
    %1726 = vmatpush.bf16.msra.mxu0 %v1107
    %1727 = vmatpush.bf16.msra.mxu0 %v1100
    %1728 = vmatpush.bf16.msra.mxu0 %v1093
    %1729 = vmatpush.bf16.msra.mxu0 %v1086
    %1730 = vmatpush.bf16.msra.mxu0 %v1079
    %1731 = vmatpush.bf16.msra.mxu0 %v1072
    %1732 = vmatpush.bf16.msra.mxu0 %v1065
    %1733 = vmatmul.bf16.gmra.mxu0 %v289
    %v1734 = vpop.f32.mrf.mxu0
    %v1735 = vadd.f32 %v501, %v1734
    %v1736 = vpop.f32.mrf.mxu0
    %1737 = vdwg.mxu0
    %1738 = vmatpush.bf16.msra.mxu0 %v1170
    %1739 = vmatpush.bf16.msra.mxu0 %v1163
    %1740 = vmatpush.bf16.msra.mxu0 %v1156
    %1741 = vmatpush.bf16.msra.mxu0 %v1149
    %1742 = vmatpush.bf16.msra.mxu0 %v1142
    %1743 = vmatpush.bf16.msra.mxu0 %v1135
    %1744 = vmatpush.bf16.msra.mxu0 %v1128
    %1745 = vmatpush.bf16.msra.mxu0 %v1121
    %1746 = vmatmul.bf16.gmra.mxu0 %v290
    %v1747 = vpop.f32.mrf.mxu0
    %v1748 = vadd.f32 %v1735, %v1747
    %v1749 = vpop.f32.mrf.mxu0
    %1750 = vdwg.mxu0
    %1751 = vmatpush.bf16.msra.mxu0 %v1226
    %1752 = vmatpush.bf16.msra.mxu0 %v1219
    %1753 = vmatpush.bf16.msra.mxu0 %v1212
    %1754 = vmatpush.bf16.msra.mxu0 %v1205
    %1755 = vmatpush.bf16.msra.mxu0 %v1198
    %1756 = vmatpush.bf16.msra.mxu0 %v1191
    %1757 = vmatpush.bf16.msra.mxu0 %v1184
    %1758 = vmatpush.bf16.msra.mxu0 %v1177
    %1759 = vmatmul.bf16.gmra.mxu0 %v291
    %v1760 = vpop.f32.mrf.mxu0
    %v1761 = vadd.f32 %v1748, %v1760
    %v1762 = vpop.f32.mrf.mxu0
    %1763 = vdwg.mxu0
    %1764 = vmatpush.bf16.msra.mxu0 0
    %1765 = vmatpush.bf16.msra.mxu0 0
    %1766 = vmatpush.bf16.msra.mxu0 0
    %1767 = vmatpush.bf16.msra.mxu0 0
    %1768 = vmatpush.bf16.msra.mxu0 0
    %1769 = vmatpush.bf16.msra.mxu0 0
    %1770 = vmatpush.bf16.msra.mxu0 0
    %1771 = vmatpush.bf16.msra.mxu0 %v1233
    %1772 = vmatmul.bf16.gmra.mxu0 %v1411
    %v1773 = vpop.f32.mrf.mxu0
    %v1774 = vadd.f32 %v1761, %v1773
    %v1775 = vpop.f32.mrf.mxu0
    %1776 = vdwg.mxu0
    %v1777 = vxor.u32 %v1462, 2147483648
    %v1778 = vxor.u32 %v1514, 2147483648
    %v1779 = vxor.u32 %v1566, 2147483648
    %v1780 = vxor.u32 %v1618, 2147483648
    %v1781 = vxor.u32 %v1670, 2147483648
    %v1782 = vxor.u32 %v1722, 2147483648
    %v1783 = vxor.u32 %v1774, 2147483648
    %v1784 = vmul.f32 %v1777, 1.442695
    %v1785 = vpow.pop %v1784
    %v1786 = vmul.f32 %v1778, 1.442695
    %v1787 = vpow.pop %v1786
    %v1788 = vmul.f32 %v1779, 1.442695
    %v1789 = vpow.pop %v1788
    %v1790 = vmul.f32 %v1780, 1.442695
    %v1791 = vpow.pop %v1790
    %v1792 = vmul.f32 %v1781, 1.442695
    %v1793 = vpow.pop %v1792
    %v1794 = vmul.f32 %v1782, 1.442695
    %v1795 = vpow.pop %v1794
    %v1796 = vmul.f32 %v1783, 1.442695
    %v1797 = vpow.pop %v1796
    %v1798 = vadd.f32 %v1785, 1.0
    %v1799 = vadd.f32 %v1787, 1.0
    %v1800 = vadd.f32 %v1789, 1.0
    %v1801 = vadd.f32 %v1791, 1.0
    %v1802 = vadd.f32 %v1793, 1.0
    %v1803 = vadd.f32 %v1795, 1.0
    %v1804 = vadd.f32 %v1797, 1.0
    %v1805 = vrcp.pop %v1798
    %v1806 = vmul.f32 %v1798, %v1805
    %v1807 = vsub.f32 1.0, %v1806
    %v1808 = vmul.f32 %v1805, %v1807
    %v1809 = vadd.f32 %v1805, %v1808
    %vm1810 = vweird.f32 %v1798
    %vm1811 = vweird.f32 %v1805
    %vm1812 = vmor %vm1810, %vm1811
    %v1813 = vsel %vm1812, %v1805, %v1809
    %v1814 = vand.u32 2147483647, %v1798
    %vm1815 = vcmp.eq.f32.partialorder %v1814, 8.507059e+37
    %v1816 = vand.u32 %v1798, 2147483648
    %v1817 = vor.u32 1.1754944e-38, %v1816
    %v1818 = vsel %vm1815, %v1817, %v1813
    %v1819 = vmul.f32 1.0, %v1818
    %v1820 = vrcp.pop %v1799
    %v1821 = vmul.f32 %v1799, %v1820
    %v1822 = vsub.f32 1.0, %v1821
    %v1823 = vmul.f32 %v1820, %v1822
    %v1824 = vadd.f32 %v1820, %v1823
    %vm1825 = vweird.f32 %v1799
    %vm1826 = vweird.f32 %v1820
    %vm1827 = vmor %vm1825, %vm1826
    %v1828 = vsel %vm1827, %v1820, %v1824
    %v1829 = vand.u32 2147483647, %v1799
    %vm1830 = vcmp.eq.f32.partialorder %v1829, 8.507059e+37
    %v1831 = vand.u32 %v1799, 2147483648
    %v1832 = vor.u32 1.1754944e-38, %v1831
    %v1833 = vsel %vm1830, %v1832, %v1828
    %v1834 = vmul.f32 1.0, %v1833
    %v1835 = vrcp.pop %v1800
    %v1836 = vmul.f32 %v1800, %v1835
    %v1837 = vsub.f32 1.0, %v1836
    %v1838 = vmul.f32 %v1835, %v1837
    %v1839 = vadd.f32 %v1835, %v1838
    %vm1840 = vweird.f32 %v1800
    %vm1841 = vweird.f32 %v1835
    %vm1842 = vmor %vm1840, %vm1841
    %v1843 = vsel %vm1842, %v1835, %v1839
    %v1844 = vand.u32 2147483647, %v1800
    %vm1845 = vcmp.eq.f32.partialorder %v1844, 8.507059e+37
    %v1846 = vand.u32 %v1800, 2147483648
    %v1847 = vor.u32 1.1754944e-38, %v1846
    %v1848 = vsel %vm1845, %v1847, %v1843
    %v1849 = vmul.f32 1.0, %v1848
    %v1850 = vrcp.pop %v1801
    %v1851 = vmul.f32 %v1801, %v1850
    %v1852 = vsub.f32 1.0, %v1851
    %v1853 = vmul.f32 %v1850, %v1852
    %v1854 = vadd.f32 %v1850, %v1853
    %vm1855 = vweird.f32 %v1801
    %vm1856 = vweird.f32 %v1850
    %vm1857 = vmor %vm1855, %vm1856
    %v1858 = vsel %vm1857, %v1850, %v1854
    %v1859 = vand.u32 2147483647, %v1801
    %vm1860 = vcmp.eq.f32.partialorder %v1859, 8.507059e+37
    %v1861 = vand.u32 %v1801, 2147483648
    %v1862 = vor.u32 1.1754944e-38, %v1861
    %v1863 = vsel %vm1860, %v1862, %v1858
    %v1864 = vmul.f32 1.0, %v1863
    %v1865 = vrcp.pop %v1802
    %v1866 = vmul.f32 %v1802, %v1865
    %v1867 = vsub.f32 1.0, %v1866
    %v1868 = vmul.f32 %v1865, %v1867
    %v1869 = vadd.f32 %v1865, %v1868
    %vm1870 = vweird.f32 %v1802
    %vm1871 = vweird.f32 %v1865
    %vm1872 = vmor %vm1870, %vm1871
    %v1873 = vsel %vm1872, %v1865, %v1869
    %v1874 = vand.u32 2147483647, %v1802
    %vm1875 = vcmp.eq.f32.partialorder %v1874, 8.507059e+37
    %v1876 = vand.u32 %v1802, 2147483648
    %v1877 = vor.u32 1.1754944e-38, %v1876
    %v1878 = vsel %vm1875, %v1877, %v1873
    %v1879 = vmul.f32 1.0, %v1878
    %v1880 = vrcp.pop %v1803
    %v1881 = vmul.f32 %v1803, %v1880
    %v1882 = vsub.f32 1.0, %v1881
    %v1883 = vmul.f32 %v1880, %v1882
    %v1884 = vadd.f32 %v1880, %v1883
    %vm1885 = vweird.f32 %v1803
    %vm1886 = vweird.f32 %v1880
    %vm1887 = vmor %vm1885, %vm1886
    %v1888 = vsel %vm1887, %v1880, %v1884
    %v1889 = vand.u32 2147483647, %v1803
    %vm1890 = vcmp.eq.f32.partialorder %v1889, 8.507059e+37
    %v1891 = vand.u32 %v1803, 2147483648
    %v1892 = vor.u32 1.1754944e-38, %v1891
    %v1893 = vsel %vm1890, %v1892, %v1888
    %v1894 = vmul.f32 1.0, %v1893
    %v1895 = vrcp.pop %v1804
    %v1896 = vmul.f32 %v1804, %v1895
    %v1897 = vsub.f32 1.0, %v1896
    %v1898 = vmul.f32 %v1895, %v1897
    %v1899 = vadd.f32 %v1895, %v1898
    %vm1900 = vweird.f32 %v1804
    %vm1901 = vweird.f32 %v1895
    %vm1902 = vmor %vm1900, %vm1901
    %v1903 = vsel %vm1902, %v1895, %v1899
    %v1904 = vand.u32 2147483647, %v1804
    %vm1905 = vcmp.eq.f32.partialorder %v1904, 8.507059e+37
    %v1906 = vand.u32 %v1804, 2147483648
    %v1907 = vor.u32 1.1754944e-38, %v1906
    %v1908 = vsel %vm1905, %v1907, %v1903
    %v1909 = vmul.f32 1.0, %v1908
    %1910 = vst [vmem:[#allocation8] sm:$0xff] %v1819
    %1911 = vst [vmem:[#allocation8 + $0x8] sm:$0xff] %v1834
    %1912 = vst [vmem:[#allocation8 + $0x10] sm:$0xff] %v1849
    %1913 = vst [vmem:[#allocation8 + $0x18] sm:$0xff] %v1864
    %1914 = vst [vmem:[#allocation8 + $0x20] sm:$0xff] %v1879
    %1915 = vst [vmem:[#allocation8 + $0x28] sm:$0xff] %v1894
    %1916 = vst [vmem:[#allocation8 + $0x30] sm:$0xff] %v1909
    // Predicated region
    $region42: #{dense_decoder.1} parent=1 // pred_check
      _
    $region43: #{dense_decoder.1} parent=1 // pred_check_branch
      %1918 = sbr.rel (0) target = $region45
    $region44: #{dense_decoder.1} parent=1 // pred_region
      %1920 = vsyncadd [#allocation4], 0
      %s1922 = sshll.u32 [#allocation8], 4
      %s1923 = int_to_ptr.vmem [resolvable:$true] %s1922
      %s1924 = sshll.u32 %s7, 4
      %s1925 = int_to_ptr.hbm [resolvable:$true] %s1924
      %1927 = dma.vmem_to_hbm [thread:$0]  %s1923, 896, %s1925, [#allocation4]
    $region45: #{dense_decoder.1} parent=1 // pred_fallthru
      _
    // Predicated region
    $region46: #{dense_decoder.1} parent=1 // pred_check
      _
    $region47: #{dense_decoder.1} parent=1 // pred_check_branch
      %1929 = sbr.rel (0) target = $region49
    $region48: #{dense_decoder.1} parent=1 // pred_region
      %1931 = dma.done [#allocation4], 896
    $region49: #{dense_decoder.1} parent=1 // pred_fallthru
      _
    %1932 = vsyncpa [#allocation3], 1
    %1933 = vsyncpa [#allocation6], 1
    %1934 = vsyncpa [#allocation4], 1

</llo_original>
